<compile_context>
chip_gen: v5e
topology: v5e:2x2
jax: 0.10.0
libtpu: 0.0.40
codegen_flags: <defaults>
</compile_context>

<pallas_src>
import jax
import jax.numpy as jnp
from jax.experimental import pallas as pl
from jax.experimental.pallas import tpu as pltpu

BN_EPS = 1e-5
_LANES = 128
# Explicit VMEM cap (review item for v7x): below physical on v5e/v6e (128 MiB)
# and v7x (64 MiB), far above what these tiles need.
_VMEM_LIMIT = 32 * 1024 * 1024


def _round_up(x, m):
    return (x + m - 1) // m * m


def _pick_th(hp, wp):
    """Largest divisor of hp giving ~<=1024 slab rows with sublane-aligned tiles."""
    target = max(1, 1024 // max(wp, 1))
    best = None
    for th in range(min(hp, target), 0, -1):
        if hp % th == 0:
            if (th * wp) % 8 == 0:
                return th
            if best is None:
                best = th
    return best if best is not None else hp


# -----------------------------------------------------------------------------
# Kernel A: pool + pad + im2col + single conv matmul + per-tile BN partials
# -----------------------------------------------------------------------------
def pool_conv_kernel(x_ref, w_ref, y_ref, stats_ref, ppad_ref, slab_ref):
    ht = pl.program_id(1)
    hp = ppad_ref.shape[0] - 2
    wp = ppad_ref.shape[1] - 2
    cin = ppad_ref.shape[2]
    rows = y_ref.shape[0]                 # Th * Wp
    th = rows // wp
    cout_p = y_ref.shape[1]

    # Pool + zero-pad once per image; the padded image stays resident in scratch
    # across all h-tiles of this batch element.
    @pl.when(ht == 0)
    def _():
        pooled = jnp.maximum(jnp.maximum(x_ref[0], x_ref[1]),
                             jnp.maximum(x_ref[2], x_ref[3]))   # (1, Hp, Wp, Cin)
        # zero only the 4 halo border strips, not the whole scratch
        zrow = jnp.zeros((1, wp + 2, cin), jnp.float32)
        zcol = jnp.zeros((hp + 2, 1, cin), jnp.float32)
        ppad_ref[0:1, :, :] = zrow
        ppad_ref[hp + 1:hp + 2, :, :] = zrow
        ppad_ref[:, 0:1, :] = zcol
        ppad_ref[:, wp + 1:wp + 2, :] = zcol
        ppad_ref[1:hp + 1, 1:wp + 1, :] = pooled.reshape(hp, wp, cin)

    # Build the im2col slab (Th*Wp, 9*Cin) once; consume it with ONE MXU matmul.
    h0 = ht * th
    for dh in range(3):
        src = ppad_ref[pl.ds(h0 + dh, th), :, :]                # (Th, Wp+2, Cin)
        for dw in range(3):
            t = dh * 3 + dw
            piece = src[:, dw:dw + wp, :].reshape(rows, cin)
            slab_ref[:, t * cin:(t + 1) * cin] = piece

    y = jnp.dot(slab_ref[...], w_ref[...], preferred_element_type=jnp.float32)
    y_ref[...] = y                                              # lane-dense store

    # Per-tile BN partials: (tile mean, centered M2). Centered second moment
    # avoids E[x^2]-mean^2 cancellation; tiles are merged exactly in the wrapper.
    inv_cnt = 1.0 / float(rows)
    tmean = jnp.sum(y, axis=0, keepdims=True) * inv_cnt         # (1, Cout_p)
    diff = y - tmean
    tm2 = jnp.sum(diff * diff, axis=0, keepdims=True)           # (1, Cout_p)
    stats_ref[...] = jnp.concatenate([tmean, tm2], axis=0).reshape(1, 2, cout_p)


# -----------------------------------------------------------------------------
# Kernel B: fused BatchNorm affine + ReLU (lane-dense elementwise pass)
# -----------------------------------------------------------------------------
def bn_relu_kernel(y_ref, scale_ref, shift_ref, o_ref):
    o_ref[...] = jnp.maximum(y_ref[...] * scale_ref[...] + shift_ref[...], 0.0)


def down_forward(x_nchw, w_oihw, b, gamma, beta):
    """down(in_ch, out_ch).forward for NCHW input, via Pallas TPU kernels."""
    del b  # Conv bias cancels exactly under training-mode BN (mean subtraction).

    N, Cin, H, W = x_nchw.shape
    Cout = w_oihw.shape[0]
    Hp, Wp = H // 2, W // 2
    cout_p = _round_up(Cout, _LANES)

    th = _pick_th(Hp, Wp)
    n_ht = Hp // th
    tile_rows = th * Wp
    M = N * Hp * Wp
    assert tile_rows % 8 == 0, "tile row count must be sublane-aligned"

    # --- layout glue (single relayout pass): NCHW -> 2x2-window slabs (NHWC) ---
    x = jnp.transpose(x_nchw, (0, 2, 3, 1)).astype(jnp.float32)
    x4 = (x.reshape(N, Hp, 2, Wp, 2, Cin)
           .transpose(2, 4, 0, 1, 3, 5)
           .reshape(4, N, Hp, Wp, Cin))
    # OIHW conv weight -> (9*Cin, Cout) im2col weight, zero-padded to lane-dense Cout
    w_mat = jnp.transpose(w_oihw, (2, 3, 1, 0)).reshape(9 * Cin, Cout)
    w_mat = jnp.pad(w_mat.astype(jnp.float32), ((0, 0), (0, cout_p - Cout)))
    gamma_p = jnp.pad(gamma.astype(jnp.float32), (0, cout_p - Cout))
    beta_p = jnp.pad(beta.astype(jnp.float32), (0, cout_p - Cout))

    # --- pass A: pool + conv (im2col, single matmul) + per-tile BN partials ----
    y_flat, stats = pl.pallas_call(
        pool_conv_kernel,
        out_shape=(
            jax.ShapeDtypeStruct((M, cout_p), jnp.float32),
            jax.ShapeDtypeStruct((N * n_ht, 2, cout_p), jnp.float32),
        ),
        grid=(N, n_ht),
        in_specs=[
            # resident across the h-tile axis (DMA'd once per batch element)
            pl.BlockSpec((4, 1, Hp, Wp, Cin), lambda n, h: (0, n, 0, 0, 0)),
            pl.BlockSpec((9 * Cin, cout_p), lambda n, h: (0, 0)),
        ],
        out_specs=(
            pl.BlockSpec((tile_rows, cout_p), lambda n, h: (n * n_ht + h, 0)),
            pl.BlockSpec((1, 2, cout_p), lambda n, h: (n * n_ht + h, 0, 0)),
        ),
        scratch_shapes=[
            pltpu.VMEM((Hp + 2, Wp + 2, Cin), jnp.float32),     # padded pooled image
            pltpu.VMEM((tile_rows, 9 * Cin), jnp.float32),      # im2col slab
        ],
        compiler_params=pltpu.CompilerParams(
            dimension_semantics=("parallel", "arbitrary"),
            vmem_limit_bytes=_VMEM_LIMIT),
    )(x4, w_mat)

    # --- exact merge of per-tile (mean, M2) -> per-channel scale/shift (tiny) --
    tile_mean = stats[:, 0, :]                                  # (T, Cout_p)
    tile_m2 = stats[:, 1, :]
    mean = jnp.mean(tile_mean, axis=0)                          # equal-count tiles
    m2 = (jnp.sum(tile_m2, axis=0)
          + float(tile_rows) * jnp.sum((tile_mean - mean) ** 2, axis=0))
    var = m2 / float(M)                                         # biased var (BN training)
    inv = jax.lax.rsqrt(var + BN_EPS)
    scale = (gamma_p * inv).reshape(1, cout_p)
    shift = (beta_p - mean * gamma_p * inv).reshape(1, cout_p)

    # --- pass B: normalize + ReLU ----------------------------------------------
    o_flat = pl.pallas_call(
        bn_relu_kernel,
        out_shape=jax.ShapeDtypeStruct((M, cout_p), jnp.float32),
        grid=(M // tile_rows,),
        in_specs=[
            pl.BlockSpec((tile_rows, cout_p), lambda i: (i, 0)),
            pl.BlockSpec((1, cout_p), lambda i: (0, 0)),
            pl.BlockSpec((1, cout_p), lambda i: (0, 0)),
        ],
        out_specs=pl.BlockSpec((tile_rows, cout_p), lambda i: (i, 0)),
        compiler_params=pltpu.CompilerParams(
            dimension_semantics=("parallel",),
            vmem_limit_bytes=_VMEM_LIMIT),
    )(y_flat, scale, shift)

    # glue: drop channel padding, back to NCHW to match PyTorch output layout
    out_nhwc = o_flat[:, :Cout].reshape(N, Hp, Wp, Cout)
    return jnp.transpose(out_nhwc, (0, 3, 1, 2))


def ref_forward(x, w, b, gamma, beta):
    """Pure-JAX reference (NCHW) for correctness checking."""
    N, C, H, W = x.shape
    xp = x.reshape(N, C, H // 2, 2, W // 2, 2).max(axis=(3, 5))
    y = jax.lax.conv_general_dilated(
        xp, w, window_strides=(1, 1), padding=((1, 1), (1, 1)),
        dimension_numbers=("NCHW", "OIHW", "NCHW")) + b[None, :, None, None]
    mean = y.mean(axis=(0, 2, 3), keepdims=True)
    var = ((y - mean) ** 2).mean(axis=(0, 2, 3), keepdims=True)
    y = (y - mean) * jax.lax.rsqrt(var + BN_EPS) \
        * gamma[None, :, None, None] + beta[None, :, None, None]
    return jnp.maximum(y, 0.0)


if __name__ == "__main__":
    key = jax.random.PRNGKey(0)
    k_x, k_w, k_b, k_g, k_bt = jax.random.split(key, 5)

    N, Cin, Cout, H, W = 2, 4, 8, 16, 16
    x = jax.random.normal(k_x, (N, Cin, H, W), jnp.float32)
    w = jax.random.normal(k_w, (Cout, Cin, 3, 3), jnp.float32) * 0.1   # Conv2d weight (OIHW)
    b = jax.random.normal(k_b, (Cout,), jnp.float32) * 0.1             # Conv2d bias
    gamma = 1.0 + 0.1 * jax.random.normal(k_g, (Cout,), jnp.float32)   # BN weight
    beta = 0.1 * jax.random.normal(k_bt, (Cout,), jnp.float32)         # BN bias

    out = jax.block_until_ready(down_forward(x, w, b, gamma, beta))
    ref = jax.block_until_ready(ref_forward(x, w, b, gamma, beta))

    assert out.shape == (N, Cout, H // 2, W // 2), out.shape
    assert jnp.allclose(out, ref, atol=2e-4, rtol=2e-4), \
        float(jnp.max(jnp.abs(out - ref)))

    print("KERNEL_OK")
</pallas_src>

<mosaic_0001>
module attributes {stable_mosaic.version = 11 : i64} {
  func.func @pool_conv_kernel(%arg0: i32, %arg1: i32, %arg2: memref<4x1x8x8x4xf32, #tpu.memory_space<vmem>>, %arg3: memref<36x128xf32, #tpu.memory_space<vmem>>, %arg4: memref<64x128xf32, #tpu.memory_space<vmem>>, %arg5: memref<1x2x128xf32, #tpu.memory_space<vmem>>, %arg6: memref<10x10x4xf32, #tpu.memory_space<vmem>>, %arg7: memref<64x36xf32, #tpu.memory_space<vmem>>) attributes {dimension_semantics = [#tpu.dimension_semantics<parallel>, #tpu.dimension_semantics<arbitrary>], iteration_bounds = array<i64: 2, 1>, scalar_prefetch = 0 : i64, scratch_operands = 2 : i64, tpu.core_type = #tpu.core_type<tc>, window_params = [{transform_indices = @transform_0, window_bounds = array<i64: 4, 1, 8, 8, 4>}, {pipeline_mode = #tpu.pipeline_mode<synchronous>, transform_indices = @transform_1, window_bounds = array<i64: 36, 128>}, {transform_indices = @transform_2, window_bounds = array<i64: 64, 128>}, {transform_indices = @transform_3, window_bounds = array<i64: 1, 2, 128>}]} {
    %c0_i32 = arith.constant 0 : i32
    %0 = arith.cmpi eq, %arg1, %c0_i32 : i32
    %1 = arith.extui %0 : i1 to i32
    %c0_i32_0 = arith.constant 0 : i32
    %2 = arith.cmpi ne, %1, %c0_i32_0 : i32
    scf.if %2 {
      %c0_29 = arith.constant 0 : index
      %c0_30 = arith.constant 0 : index
      %c0_31 = arith.constant 0 : index
      %c0_32 = arith.constant 0 : index
      %c0_33 = arith.constant 0 : index
      %56 = vector.load %arg2[%c0_29, %c0_30, %c0_31, %c0_32, %c0_33] : memref<4x1x8x8x4xf32, #tpu.memory_space<vmem>>, vector<1x1x8x8x4xf32>
      %57 = vector.shape_cast %56 : vector<1x1x8x8x4xf32> to vector<1x8x8x4xf32>
      %c1 = arith.constant 1 : index
      %c0_34 = arith.constant 0 : index
      %c0_35 = arith.constant 0 : index
      %c0_36 = arith.constant 0 : index
      %c0_37 = arith.constant 0 : index
      %58 = vector.load %arg2[%c1, %c0_34, %c0_35, %c0_36, %c0_37] : memref<4x1x8x8x4xf32, #tpu.memory_space<vmem>>, vector<1x1x8x8x4xf32>
      %59 = vector.shape_cast %58 : vector<1x1x8x8x4xf32> to vector<1x8x8x4xf32>
      %60 = arith.maximumf %57, %59 : vector<1x8x8x4xf32>
      %c2 = arith.constant 2 : index
      %c0_38 = arith.constant 0 : index
      %c0_39 = arith.constant 0 : index
      %c0_40 = arith.constant 0 : index
      %c0_41 = arith.constant 0 : index
      %61 = vector.load %arg2[%c2, %c0_38, %c0_39, %c0_40, %c0_41] : memref<4x1x8x8x4xf32, #tpu.memory_space<vmem>>, vector<1x1x8x8x4xf32>
      %62 = vector.shape_cast %61 : vector<1x1x8x8x4xf32> to vector<1x8x8x4xf32>
      %c3 = arith.constant 3 : index
      %c0_42 = arith.constant 0 : index
      %c0_43 = arith.constant 0 : index
      %c0_44 = arith.constant 0 : index
      %c0_45 = arith.constant 0 : index
      %63 = vector.load %arg2[%c3, %c0_42, %c0_43, %c0_44, %c0_45] : memref<4x1x8x8x4xf32, #tpu.memory_space<vmem>>, vector<1x1x8x8x4xf32>
      %64 = vector.shape_cast %63 : vector<1x1x8x8x4xf32> to vector<1x8x8x4xf32>
      %65 = arith.maximumf %62, %64 : vector<1x8x8x4xf32>
      %66 = arith.maximumf %60, %65 : vector<1x8x8x4xf32>
      %cst_46 = arith.constant 0.000000e+00 : f32
      %67 = vector.broadcast %cst_46 : f32 to vector<1x10x4xf32>
      %cst_47 = arith.constant 0.000000e+00 : f32
      %68 = vector.broadcast %cst_47 : f32 to vector<10x1x4xf32>
      %c0_48 = arith.constant 0 : index
      %c0_49 = arith.constant 0 : index
      %c0_50 = arith.constant 0 : index
      %69 = vector.load %arg6[%c0_48, %c0_49, %c0_50] : memref<10x10x4xf32, #tpu.memory_space<vmem>>, vector<1x10x4xf32>
      tpu.vector_store %arg6[%c0_48, %c0_49, %c0_50], %67 {strides = array<i32>} : memref<10x10x4xf32, #tpu.memory_space<vmem>>, vector<1x10x4xf32>,
      %c9 = arith.constant 9 : index
      %c0_51 = arith.constant 0 : index
      %c0_52 = arith.constant 0 : index
      %70 = vector.load %arg6[%c9, %c0_51, %c0_52] : memref<10x10x4xf32, #tpu.memory_space<vmem>>, vector<1x10x4xf32>
      tpu.vector_store %arg6[%c9, %c0_51, %c0_52], %67 {strides = array<i32>} : memref<10x10x4xf32, #tpu.memory_space<vmem>>, vector<1x10x4xf32>,
      %c0_53 = arith.constant 0 : index
      %c0_54 = arith.constant 0 : index
      %c0_55 = arith.constant 0 : index
      %71 = vector.load %arg6[%c0_53, %c0_54, %c0_55] : memref<10x10x4xf32, #tpu.memory_space<vmem>>, vector<10x1x4xf32>
      tpu.vector_store %arg6[%c0_53, %c0_54, %c0_55], %68 {strides = array<i32>} : memref<10x10x4xf32, #tpu.memory_space<vmem>>, vector<10x1x4xf32>,
      %c0_56 = arith.constant 0 : index
      %c9_57 = arith.constant 9 : index
      %c0_58 = arith.constant 0 : index
      %72 = vector.load %arg6[%c0_56, %c9_57, %c0_58] : memref<10x10x4xf32, #tpu.memory_space<vmem>>, vector<10x1x4xf32>
      tpu.vector_store %arg6[%c0_56, %c9_57, %c0_58], %68 {strides = array<i32>} : memref<10x10x4xf32, #tpu.memory_space<vmem>>, vector<10x1x4xf32>,
      %73 = vector.shape_cast %66 : vector<1x8x8x4xf32> to vector<8x8x4xf32>
      %c1_59 = arith.constant 1 : index
      %c1_60 = arith.constant 1 : index
      %c0_61 = arith.constant 0 : index
      %74 = vector.load %arg6[%c1_59, %c1_60, %c0_61] : memref<10x10x4xf32, #tpu.memory_space<vmem>>, vector<8x8x4xf32>
      tpu.vector_store %arg6[%c1_59, %c1_60, %c0_61], %73 {strides = array<i32>} : memref<10x10x4xf32, #tpu.memory_space<vmem>>, vector<8x8x4xf32>,
    } else {
    }
    %c8_i32 = arith.constant 8 : i32
    %3 = arith.muli %arg1, %c8_i32 : i32
    %c0_i32_1 = arith.constant 0 : i32
    %4 = arith.addi %3, %c0_i32_1 : i32
    %5 = arith.index_cast %4 : i32 to index
    %c0 = arith.constant 0 : index
    %c0_2 = arith.constant 0 : index
    %6 = vector.load %arg6[%5, %c0, %c0_2] : memref<10x10x4xf32, #tpu.memory_space<vmem>>, vector<8x10x4xf32>
    %7 = vector.extract_strided_slice %6 {offsets = [0, 0, 0], sizes = [8, 8, 4], strides = [1, 1, 1]} : vector<8x10x4xf32> to vector<8x8x4xf32>
    %8 = vector.shape_cast %7 : vector<8x8x4xf32> to vector<64x4xf32>
    %c0_3 = arith.constant 0 : index
    %c0_4 = arith.constant 0 : index
    %9 = vector.load %arg7[%c0_3, %c0_4] : memref<64x36xf32, #tpu.memory_space<vmem>>, vector<64x4xf32>
    tpu.vector_store %arg7[%c0_3, %c0_4], %8 {strides = array<i32>} : memref<64x36xf32, #tpu.memory_space<vmem>>, vector<64x4xf32>,
    %10 = vector.extract_strided_slice %6 {offsets = [0, 1, 0], sizes = [8, 8, 4], strides = [1, 1, 1]} : vector<8x10x4xf32> to vector<8x8x4xf32>
    %11 = vector.shape_cast %10 : vector<8x8x4xf32> to vector<64x4xf32>
    %c0_5 = arith.constant 0 : index
    %c4 = arith.constant 4 : index
    %12 = vector.load %arg7[%c0_5, %c4] : memref<64x36xf32, #tpu.memory_space<vmem>>, vector<64x4xf32>
    tpu.vector_store %arg7[%c0_5, %c4], %11 {strides = array<i32>} : memref<64x36xf32, #tpu.memory_space<vmem>>, vector<64x4xf32>,
    %13 = vector.extract_strided_slice %6 {offsets = [0, 2, 0], sizes = [8, 8, 4], strides = [1, 1, 1]} : vector<8x10x4xf32> to vector<8x8x4xf32>
    %14 = vector.shape_cast %13 : vector<8x8x4xf32> to vector<64x4xf32>
    %c0_6 = arith.constant 0 : index
    %c8 = arith.constant 8 : index
    %15 = vector.load %arg7[%c0_6, %c8] : memref<64x36xf32, #tpu.memory_space<vmem>>, vector<64x4xf32>
    tpu.vector_store %arg7[%c0_6, %c8], %14 {strides = array<i32>} : memref<64x36xf32, #tpu.memory_space<vmem>>, vector<64x4xf32>,
    %c1_i32 = arith.constant 1 : i32
    %16 = arith.addi %3, %c1_i32 : i32
    %17 = arith.index_cast %16 : i32 to index
    %c0_7 = arith.constant 0 : index
    %c0_8 = arith.constant 0 : index
    %18 = vector.load %arg6[%17, %c0_7, %c0_8] : memref<10x10x4xf32, #tpu.memory_space<vmem>>, vector<8x10x4xf32>
    %19 = vector.extract_strided_slice %18 {offsets = [0, 0, 0], sizes = [8, 8, 4], strides = [1, 1, 1]} : vector<8x10x4xf32> to vector<8x8x4xf32>
    %20 = vector.shape_cast %19 : vector<8x8x4xf32> to vector<64x4xf32>
    %c0_9 = arith.constant 0 : index
    %c12 = arith.constant 12 : index
    %21 = vector.load %arg7[%c0_9, %c12] : memref<64x36xf32, #tpu.memory_space<vmem>>, vector<64x4xf32>
    tpu.vector_store %arg7[%c0_9, %c12], %20 {strides = array<i32>} : memref<64x36xf32, #tpu.memory_space<vmem>>, vector<64x4xf32>,
    %22 = vector.extract_strided_slice %18 {offsets = [0, 1, 0], sizes = [8, 8, 4], strides = [1, 1, 1]} : vector<8x10x4xf32> to vector<8x8x4xf32>
    %23 = vector.shape_cast %22 : vector<8x8x4xf32> to vector<64x4xf32>
    %c0_10 = arith.constant 0 : index
    %c16 = arith.constant 16 : index
    %24 = vector.load %arg7[%c0_10, %c16] : memref<64x36xf32, #tpu.memory_space<vmem>>, vector<64x4xf32>
    tpu.vector_store %arg7[%c0_10, %c16], %23 {strides = array<i32>} : memref<64x36xf32, #tpu.memory_space<vmem>>, vector<64x4xf32>,
    %25 = vector.extract_strided_slice %18 {offsets = [0, 2, 0], sizes = [8, 8, 4], strides = [1, 1, 1]} : vector<8x10x4xf32> to vector<8x8x4xf32>
    %26 = vector.shape_cast %25 : vector<8x8x4xf32> to vector<64x4xf32>
    %c0_11 = arith.constant 0 : index
    %c20 = arith.constant 20 : index
    %27 = vector.load %arg7[%c0_11, %c20] : memref<64x36xf32, #tpu.memory_space<vmem>>, vector<64x4xf32>
    tpu.vector_store %arg7[%c0_11, %c20], %26 {strides = array<i32>} : memref<64x36xf32, #tpu.memory_space<vmem>>, vector<64x4xf32>,
    %c2_i32 = arith.constant 2 : i32
    %28 = arith.addi %3, %c2_i32 : i32
    %29 = arith.index_cast %28 : i32 to index
    %c0_12 = arith.constant 0 : index
    %c0_13 = arith.constant 0 : index
    %30 = vector.load %arg6[%29, %c0_12, %c0_13] : memref<10x10x4xf32, #tpu.memory_space<vmem>>, vector<8x10x4xf32>
    %31 = vector.extract_strided_slice %30 {offsets = [0, 0, 0], sizes = [8, 8, 4], strides = [1, 1, 1]} : vector<8x10x4xf32> to vector<8x8x4xf32>
    %32 = vector.shape_cast %31 : vector<8x8x4xf32> to vector<64x4xf32>
    %c0_14 = arith.constant 0 : index
    %c24 = arith.constant 24 : index
    %33 = vector.load %arg7[%c0_14, %c24] : memref<64x36xf32, #tpu.memory_space<vmem>>, vector<64x4xf32>
    tpu.vector_store %arg7[%c0_14, %c24], %32 {strides = array<i32>} : memref<64x36xf32, #tpu.memory_space<vmem>>, vector<64x4xf32>,
    %34 = vector.extract_strided_slice %30 {offsets = [0, 1, 0], sizes = [8, 8, 4], strides = [1, 1, 1]} : vector<8x10x4xf32> to vector<8x8x4xf32>
    %35 = vector.shape_cast %34 : vector<8x8x4xf32> to vector<64x4xf32>
    %c0_15 = arith.constant 0 : index
    %c28 = arith.constant 28 : index
    %36 = vector.load %arg7[%c0_15, %c28] : memref<64x36xf32, #tpu.memory_space<vmem>>, vector<64x4xf32>
    tpu.vector_store %arg7[%c0_15, %c28], %35 {strides = array<i32>} : memref<64x36xf32, #tpu.memory_space<vmem>>, vector<64x4xf32>,
    %37 = vector.extract_strided_slice %30 {offsets = [0, 2, 0], sizes = [8, 8, 4], strides = [1, 1, 1]} : vector<8x10x4xf32> to vector<8x8x4xf32>
    %38 = vector.shape_cast %37 : vector<8x8x4xf32> to vector<64x4xf32>
    %c0_16 = arith.constant 0 : index
    %c32 = arith.constant 32 : index
    %39 = vector.load %arg7[%c0_16, %c32] : memref<64x36xf32, #tpu.memory_space<vmem>>, vector<64x4xf32>
    tpu.vector_store %arg7[%c0_16, %c32], %38 {strides = array<i32>} : memref<64x36xf32, #tpu.memory_space<vmem>>, vector<64x4xf32>,
    %c0_17 = arith.constant 0 : index
    %c0_18 = arith.constant 0 : index
    %40 = vector.load %arg7[%c0_17, %c0_18] : memref<64x36xf32, #tpu.memory_space<vmem>>, vector<64x36xf32>
    %c0_19 = arith.constant 0 : index
    %c0_20 = arith.constant 0 : index
    %41 = vector.load %arg3[%c0_19, %c0_20] : memref<36x128xf32, #tpu.memory_space<vmem>>, vector<36x128xf32>
    %cst = arith.constant dense<0.000000e+00> : vector<64x128xf32>
    %42 = tpu.matmul %40, %41, %cst {dimension_numbers = #tpu.dot_dimension_numbers<[1], [0], [0], [1], [0, 0, 1, 1], [], []>} : vector<64x36xf32>, vector<36x128xf32>, vector<64x128xf32> -> vector<64x128xf32>
    %c0_21 = arith.constant 0 : index
    %c0_22 = arith.constant 0 : index
    %43 = vector.load %arg4[%c0_21, %c0_22] : memref<64x128xf32, #tpu.memory_space<vmem>>, vector<64x128xf32>
    tpu.vector_store %arg4[%c0_21, %c0_22], %42 {strides = array<i32>} : memref<64x128xf32, #tpu.memory_space<vmem>>, vector<64x128xf32>,
    %cst_23 = arith.constant dense<0.000000e+00> : vector<128xf32>
    %44 = vector.multi_reduction <add>, %42, %cst_23 [0] : vector<64x128xf32> to vector<128xf32>
    %45 = vector.shape_cast %44 : vector<128xf32> to vector<1x128xf32>
    %cst_24 = arith.constant 1.562500e-02 : f32
    %46 = vector.broadcast %cst_24 : f32 to vector<1x128xf32>
    %47 = arith.mulf %45, %46 : vector<1x128xf32>
    %48 = vector.broadcast %47 : vector<1x128xf32> to vector<64x128xf32>
    %49 = arith.subf %42, %48 : vector<64x128xf32>
    %50 = arith.mulf %49, %49 : vector<64x128xf32>
    %cst_25 = arith.constant dense<0.000000e+00> : vector<128xf32>
    %51 = vector.multi_reduction <add>, %50, %cst_25 [0] : vector<64x128xf32> to vector<128xf32>
    %52 = vector.shape_cast %51 : vector<128xf32> to vector<1x128xf32>
    %53 = tpu.concatenate %47, %52 in 0 : vector<1x128xf32>, vector<1x128xf32> -> vector<2x128xf32>
    %54 = vector.shape_cast %53 : vector<2x128xf32> to vector<1x2x128xf32>
    %c0_26 = arith.constant 0 : index
    %c0_27 = arith.constant 0 : index
    %c0_28 = arith.constant 0 : index
    %55 = vector.load %arg5[%c0_26, %c0_27, %c0_28] : memref<1x2x128xf32, #tpu.memory_space<vmem>>, vector<1x2x128xf32>
    tpu.vector_store %arg5[%c0_26, %c0_27, %c0_28], %54 {strides = array<i32>} : memref<1x2x128xf32, #tpu.memory_space<vmem>>, vector<1x2x128xf32>,
    return
  }
  func.func @transform_0(%arg0: i32, %arg1: i32) -> (i32, i32, i32, i32, i32) {
    %c0_i32 = arith.constant 0 : i32
    %c0_i32_0 = arith.constant 0 : i32
    %c0_i32_1 = arith.constant 0 : i32
    %c0_i32_2 = arith.constant 0 : i32
    %c0_i32_3 = arith.constant 0 : i32
    return %c0_i32, %arg0, %c0_i32_0, %c0_i32_1, %c0_i32_2 : i32, i32, i32, i32, i32
  }
  func.func @transform_1(%arg0: i32, %arg1: i32) -> (i32, i32) {
    %c0_i32 = arith.constant 0 : i32
    %c0_i32_0 = arith.constant 0 : i32
    %c0_i32_1 = arith.constant 0 : i32
    return %c0_i32, %c0_i32_0 : i32, i32
  }
  func.func @transform_2(%arg0: i32, %arg1: i32) -> (i32, i32) {
    %c1_i32 = arith.constant 1 : i32
    %0 = arith.muli %arg0, %c1_i32 : i32
    %1 = arith.addi %0, %arg1 : i32
    %c0_i32 = arith.constant 0 : i32
    %c0_i32_0 = arith.constant 0 : i32
    return %1, %c0_i32 : i32, i32
  }
  func.func @transform_3(%arg0: i32, %arg1: i32) -> (i32, i32, i32) {
    %c1_i32 = arith.constant 1 : i32
    %0 = arith.muli %arg0, %c1_i32 : i32
    %1 = arith.addi %0, %arg1 : i32
    %c0_i32 = arith.constant 0 : i32
    %c0_i32_0 = arith.constant 0 : i32
    %c0_i32_1 = arith.constant 0 : i32
    return %1, %c0_i32, %c0_i32_0 : i32, i32, i32
  }
}

</mosaic_0001>

<llo_original>
// kernel: tpu_custom_call.1
$region0: #{tpu_custom_call.1}
  #allocation0 [shape = 'u32[]', space=smem, size = 0x4, offset = 0x4, fixed_abs, tag = 'smem constant byte address 0x4 - core index']
  #allocation1 [shape = 'u32[72,128]{1,0:T(1,128)}', space=vmem, size = 0x9000, scoped, tag = 'internal scratch']
  #allocation2 [shape = 'f32[10,10,4]{2,1,0:T(8,128)}', space=vmem, size = 0x14000, scoped, tag = 'scratch operand']
  #allocation3 [shape = 'f32[64,36]{1,0:T(8,128)}', space=vmem, size = 0x8000, scoped, tag = 'scratch operand']
  %s0 = inlined_call_operand.vmem [shape: f32[4,2,8,8,4], index: 0, kind: input, shape index: {}]
  %s1 = inlined_call_operand.vmem [shape: f32[36,128], index: 1, kind: input, shape index: {}]
  %s2 = inlined_call_operand.hbm [shape: f32[128,128], index: 2, kind: output, shape index: {0}]
  %s3 = inlined_call_operand.hbm [shape: f32[2,2,128], index: 3, kind: output, shape index: {1}]
  %4 = xla_tuple %s2, %s3
  %s5 = sld [smem:[#allocation0]]
  $region91: #{tpu_custom_call.1} parent=0
    _
  %s7 = ssub.s32 1, %s5
  %s8 = scalar_select 0, %s7, %s5
  $region1: #{tpu_custom_call.1} parent=0
    #allocation4 [shape = 'u8[262144]{0}', space=vmem, size = 0x40000, scoped, tag = 'input window, operand 0']
    #allocation5 [shape = 'u8[65536]{0}', space=vmem, size = 0x10000, scoped, tag = 'output window, operand 0']
    #allocation6 [shape = 's32[2]{0}', space=sflag, size = 0x8, scoped, tag = 'scoped memory for tpu_custom_call.1']
    #allocation7 [shape = 'u8[2048]{0}', space=vmem, size = 0x800, scoped, tag = 'output window, operand 1']
    #allocation8 [shape = 's32[2]{0}', space=sflag, size = 0x8, scoped, tag = 'scoped memory for tpu_custom_call.1']
    %9 = vsyncpa [#allocation6], 0
    %s10 = scalar_lea.sflag [#allocation6], 1
    %11 = vsyncpa %s10, 0
    %12 = vsyncpa [#allocation8], 0
    %s13 = scalar_lea.sflag [#allocation8], 1
    %14 = vsyncpa %s13, 0
    loop: start=0, step=1, limit=4
    $region2: #{tpu_custom_call.1} parent=1 // loop_pre_header
      _
    $region3: #{tpu_custom_call.1} parent=1 // loop_header
      %s16 = sphi 0, %s20
      %p17 = scmp.ge.s32.totalorder %s16, 4
      %s23 = sphi 0, %s35
      %s24 = sphi 0, %s31
      %s25 = sphi 0, %s23
      %s26 = sphi 0, %s24
      %s27 = sphi 0, %s25
      %s28 = sphi 0, %s26
      %s38 = sphi 0, %s40
      %s41 = sphi 0, %s38
      %s42 = sphi 0, %s41
      %s58 = sphi 0, %s42
      %s62 = sphi 0, %s62
      %s64 = sphi 0, %s62
      %s65 = sphi 0, %s64
      %s79 = sphi 0, %s65
      %s87 = sphi 0, %s89
      %s90 = sphi 0, %s87
      %s91 = sphi 0, %s90
      %s107 = sphi 0, %s91
      %s115 = sphi 0, %s117
      %s118 = sphi 0, %s115
      %s119 = sphi 0, %s118
      %s135 = sphi 0, %s119
    $region4: #{tpu_custom_call.1} parent=1 // loop_header_branch
      %19 = sbr.rel (%p17) target = $region8
    $region5: #{tpu_custom_call.1} parent=1 // loop_body
      %s21 = ssub.s32 %s16, 1
      %s22 = ssub.s32 %s16, 2
      %s29 = sadd.s32 1, %s24
      %p30 = scmp.ge.s32.totalorder %s29, 1
      %s31 = scalar_select %p30, 0, %s29
      %s32 = sadd.s32 1, %s23
      %s33 = scalar_select %p30, %s32, %s23
      %p34 = scmp.ge.s32.totalorder %s33, 2
      %s35 = scalar_select %p34, 0, %s33
      %s36 = ssub.s32 %s23, %s35
      %p37 = scmp.eq.s32.totalorder %s36, 0
      %s39 = sadd.s32 %s38, 1
      %s40 = scalar_select %p37, %s38, %s39
      %p43 = pneg %p37
      %p44 = scmp.eq.s32.totalorder %s16, 1
      %p45 = por %p43, %p44
      %p46 = scmp.ne.s32.totalorder %s38, %s41
      %p47 = scmp.eq.s32.totalorder %s16, 0
      %p48 = por %p46, %p47
      %p49 = scmp.ne.s32.totalorder %s38, %s41
      %p50 = scmp.eq.s32.totalorder %s21, 1
      %p51 = por %p49, %p50
      %p52 = scmp.ne.s32.totalorder %s41, %s42
      %p53 = scmp.eq.s32.totalorder %s21, 0
      %p54 = por %p52, %p53
      %p55 = scmp.ne.s32.totalorder %s41, %s42
      %p56 = scmp.eq.s32.totalorder %s22, 1
      %p57 = por %p55, %p56
      %p59 = scmp.ne.s32.totalorder %s42, %s58
      %p60 = scmp.eq.s32.totalorder %s22, 0
      %p61 = por %p59, %p60
      %s63 = sadd.s32 %s62, 1
      %p66 = scmp.eq.s32.totalorder %s16, 1
      %p67 = scmp.ne.s32.totalorder %s62, %s64
      %p68 = scmp.eq.s32.totalorder %s16, 0
      %p69 = por %p67, %p68
      %p70 = scmp.ne.s32.totalorder %s62, %s64
      %p71 = scmp.eq.s32.totalorder %s21, 1
      %p72 = por %p70, %p71
      %p73 = scmp.ne.s32.totalorder %s64, %s65
      %p74 = scmp.eq.s32.totalorder %s21, 0
      %p75 = por %p73, %p74
      %p76 = scmp.ne.s32.totalorder %s64, %s65
      %p77 = scmp.eq.s32.totalorder %s22, 1
      %p78 = por %p76, %p77
      %p80 = scmp.ne.s32.totalorder %s65, %s79
      %p81 = scmp.eq.s32.totalorder %s22, 0
      %p82 = por %p80, %p81
      %s83 = sadd.s32 %s23, %s24
      %s84 = sadd.s32 %s35, %s31
      %s85 = ssub.s32 %s83, %s84
      %p86 = scmp.eq.s32.totalorder %s85, 0
      %s88 = sadd.s32 %s87, 1
      %s89 = scalar_select %p86, %s87, %s88
      %p92 = pneg %p86
      %p93 = scmp.eq.s32.totalorder %s16, 1
      %p94 = por %p92, %p93
      %p95 = scmp.ne.s32.totalorder %s87, %s90
      %p96 = scmp.eq.s32.totalorder %s16, 0
      %p97 = por %p95, %p96
      %p98 = scmp.ne.s32.totalorder %s87, %s90
      %p99 = scmp.eq.s32.totalorder %s21, 1
      %p100 = por %p98, %p99
      %p101 = scmp.ne.s32.totalorder %s90, %s91
      %p102 = scmp.eq.s32.totalorder %s21, 0
      %p103 = por %p101, %p102
      %p104 = scmp.ne.s32.totalorder %s90, %s91
      %p105 = scmp.eq.s32.totalorder %s22, 1
      %p106 = por %p104, %p105
      %p108 = scmp.ne.s32.totalorder %s91, %s107
      %p109 = scmp.eq.s32.totalorder %s22, 0
      %p110 = por %p108, %p109
      %s111 = sadd.s32 %s23, %s24
      %s112 = sadd.s32 %s35, %s31
      %s113 = ssub.s32 %s111, %s112
      %p114 = scmp.eq.s32.totalorder %s113, 0
      %s116 = sadd.s32 %s115, 1
      %s117 = scalar_select %p114, %s115, %s116
      %p120 = pneg %p114
      %p121 = scmp.eq.s32.totalorder %s16, 1
      %p122 = por %p120, %p121
      %p123 = scmp.ne.s32.totalorder %s115, %s118
      %p124 = scmp.eq.s32.totalorder %s16, 0
      %p125 = por %p123, %p124
      %p126 = scmp.ne.s32.totalorder %s115, %s118
      %p127 = scmp.eq.s32.totalorder %s21, 1
      %p128 = por %p126, %p127
      %p129 = scmp.ne.s32.totalorder %s118, %s119
      %p130 = scmp.eq.s32.totalorder %s21, 0
      %p131 = por %p129, %p130
      %p132 = scmp.ne.s32.totalorder %s118, %s119
      %p133 = scmp.eq.s32.totalorder %s22, 1
      %p134 = por %p132, %p133
      %p136 = scmp.ne.s32.totalorder %s119, %s135
      %p137 = scmp.eq.s32.totalorder %s22, 0
      %p138 = por %p136, %p137
      %p139 = scmp.le.s32.totalorder 1, %s16
      %p140 = scmp.lt.s32.totalorder %s16, 3
      %p141 = pnand %p139, %p140
      %p142 = pneg %p141
      // Predicated region
      $region9: #{tpu_custom_call.1} parent=5 // pred_check
        _
      $region10: #{tpu_custom_call.1} parent=5 // pred_check_branch
        %144 = sbr.rel (%p141) target = $region12
      $region11: #{tpu_custom_call.1} parent=5 // pred_region
        %s145 = ssub.s32 %s16, 1
        // Predicated region
        $region13: #{tpu_custom_call.1} parent=11 // pred_check
          %p146 = pneg %p75
        $region14: #{tpu_custom_call.1} parent=11 // pred_check_branch
          %148 = sbr.rel (%p146) target = $region16
        $region15: #{tpu_custom_call.1} parent=11 // pred_region
          _
        $region16: #{tpu_custom_call.1} parent=11 // pred_fallthru
          _
      $region12: #{tpu_custom_call.1} parent=5 // pred_fallthru
        _
      %p149 = scmp.lt.s32.totalorder %s16, 2
      // Predicated region
      $region17: #{tpu_custom_call.1} parent=5 // pred_check
        %p150 = pneg %p149
      $region18: #{tpu_custom_call.1} parent=5 // pred_check_branch
        %152 = sbr.rel (%p150) target = $region20
      $region19: #{tpu_custom_call.1} parent=5 // pred_region
        // Predicated region
        $region21: #{tpu_custom_call.1} parent=19 // pred_check
          %p153 = pneg %p48
        $region22: #{tpu_custom_call.1} parent=19 // pred_check_branch
          %155 = sbr.rel (%p153) target = $region24
        $region23: #{tpu_custom_call.1} parent=19 // pred_region
          %s156 = sand.u32 %s38, 1
          %s157 = sand.u32 %s38, 1
          %s158 = smul.addr %s157, 256
          %s159 = scalar_lea.vmem [#allocation4], %s158
          %s160 = smul.addr %s23, 8
          %s161 = smul.addr %s160, 8
          %s162 = scalar_lea.vmem %s0, %s161
          // Predicated region
          $region25: #{tpu_custom_call.1} parent=23 // pred_check
            _
          $region26: #{tpu_custom_call.1} parent=23 // pred_check_branch
            %164 = sbr.rel (0) target = $region28
          $region27: #{tpu_custom_call.1} parent=23 // pred_region
            // Predicated region
            $region29: #{tpu_custom_call.1} parent=27 // pred_check
              _
            $region30: #{tpu_custom_call.1} parent=27 // pred_check_branch
              %166 = sbr.rel (0) target = $region32
            $region31: #{tpu_custom_call.1} parent=27 // pred_region
              // Predicated region
              $region44: #{tpu_custom_call.1} parent=31 // pred_check
                _
              $region45: #{tpu_custom_call.1} parent=31 // pred_check_branch
                %244 = sbr.rel (0) target = $region47
              $region46: #{tpu_custom_call.1} parent=31 // pred_region
                loop: start=0, step=1, limit=1
                $region48: #{tpu_custom_call.1} parent=46 // loop_pre_header
                  _
                $region49: #{tpu_custom_call.1} parent=46 // loop_header
                  %s246 = sphi 0, %s250
                  %p247 = scmp.ge.s32.totalorder %s246, 1
                  %s251 = sphi %s162, %s162
                  %s252 = sphi %s159, %s159
                $region50: #{tpu_custom_call.1} parent=46 // loop_header_branch
                  %249 = sbr.rel (%p247) target = $region54
                $region51: #{tpu_custom_call.1} parent=46 // loop_body
                  %v253 = vld [vmem:[%s251] sm:$0xff]
                  %254 = vst [vmem:[%s252] sm:$0xff] %v253
                  %v255 = vld [vmem:[%s251 + $0x8] sm:$0xff]
                  %256 = vst [vmem:[%s252 + $0x8] sm:$0xff] %v255
                  %v257 = vld [vmem:[%s251 + $0x10] sm:$0xff]
                  %258 = vst [vmem:[%s252 + $0x10] sm:$0xff] %v257
                  %v259 = vld [vmem:[%s251 + $0x18] sm:$0xff]
                  %260 = vst [vmem:[%s252 + $0x18] sm:$0xff] %v259
                  %v261 = vld [vmem:[%s251 + $0x20] sm:$0xff]
                  %262 = vst [vmem:[%s252 + $0x20] sm:$0xff] %v261
                  %v263 = vld [vmem:[%s251 + $0x28] sm:$0xff]
                  %264 = vst [vmem:[%s252 + $0x28] sm:$0xff] %v263
                  %v265 = vld [vmem:[%s251 + $0x30] sm:$0xff]
                  %266 = vst [vmem:[%s252 + $0x30] sm:$0xff] %v265
                  %v267 = vld [vmem:[%s251 + $0x38] sm:$0xff]
                  %268 = vst [vmem:[%s252 + $0x38] sm:$0xff] %v267
                  %v269 = vld [vmem:[%s251 + $0x80] sm:$0xff]
                  %270 = vst [vmem:[%s252 + $0x40] sm:$0xff] %v269
                  %v271 = vld [vmem:[%s251 + $0x88] sm:$0xff]
                  %272 = vst [vmem:[%s252 + $0x48] sm:$0xff] %v271
                  %v273 = vld [vmem:[%s251 + $0x90] sm:$0xff]
                  %274 = vst [vmem:[%s252 + $0x50] sm:$0xff] %v273
                  %v275 = vld [vmem:[%s251 + $0x98] sm:$0xff]
                  %276 = vst [vmem:[%s252 + $0x58] sm:$0xff] %v275
                  %v277 = vld [vmem:[%s251 + $0xa0] sm:$0xff]
                  %278 = vst [vmem:[%s252 + $0x60] sm:$0xff] %v277
                  %v279 = vld [vmem:[%s251 + $0xa8] sm:$0xff]
                  %280 = vst [vmem:[%s252 + $0x68] sm:$0xff] %v279
                  %v281 = vld [vmem:[%s251 + $0xb0] sm:$0xff]
                  %282 = vst [vmem:[%s252 + $0x70] sm:$0xff] %v281
                  %v283 = vld [vmem:[%s251 + $0xb8] sm:$0xff]
                  %284 = vst [vmem:[%s252 + $0x78] sm:$0xff] %v283
                  %v285 = vld [vmem:[%s251 + $0x100] sm:$0xff]
                  %286 = vst [vmem:[%s252 + $0x80] sm:$0xff] %v285
                  %v287 = vld [vmem:[%s251 + $0x108] sm:$0xff]
                  %288 = vst [vmem:[%s252 + $0x88] sm:$0xff] %v287
                  %v289 = vld [vmem:[%s251 + $0x110] sm:$0xff]
                  %290 = vst [vmem:[%s252 + $0x90] sm:$0xff] %v289
                  %v291 = vld [vmem:[%s251 + $0x118] sm:$0xff]
                  %292 = vst [vmem:[%s252 + $0x98] sm:$0xff] %v291
                  %v293 = vld [vmem:[%s251 + $0x120] sm:$0xff]
                  %294 = vst [vmem:[%s252 + $0xa0] sm:$0xff] %v293
                  %v295 = vld [vmem:[%s251 + $0x128] sm:$0xff]
                  %296 = vst [vmem:[%s252 + $0xa8] sm:$0xff] %v295
                  %v297 = vld [vmem:[%s251 + $0x130] sm:$0xff]
                  %298 = vst [vmem:[%s252 + $0xb0] sm:$0xff] %v297
                  %v299 = vld [vmem:[%s251 + $0x138] sm:$0xff]
                  %300 = vst [vmem:[%s252 + $0xb8] sm:$0xff] %v299
                  %v301 = vld [vmem:[%s251 + $0x180] sm:$0xff]
                  %302 = vst [vmem:[%s252 + $0xc0] sm:$0xff] %v301
                  %v303 = vld [vmem:[%s251 + $0x188] sm:$0xff]
                  %304 = vst [vmem:[%s252 + $0xc8] sm:$0xff] %v303
                  %v305 = vld [vmem:[%s251 + $0x190] sm:$0xff]
                  %306 = vst [vmem:[%s252 + $0xd0] sm:$0xff] %v305
                  %v307 = vld [vmem:[%s251 + $0x198] sm:$0xff]
                  %308 = vst [vmem:[%s252 + $0xd8] sm:$0xff] %v307
                  %v309 = vld [vmem:[%s251 + $0x1a0] sm:$0xff]
                  %310 = vst [vmem:[%s252 + $0xe0] sm:$0xff] %v309
                  %v311 = vld [vmem:[%s251 + $0x1a8] sm:$0xff]
                  %312 = vst [vmem:[%s252 + $0xe8] sm:$0xff] %v311
                  %v313 = vld [vmem:[%s251 + $0x1b0] sm:$0xff]
                  %314 = vst [vmem:[%s252 + $0xf0] sm:$0xff] %v313
                  %v315 = vld [vmem:[%s251 + $0x1b8] sm:$0xff]
                  %316 = vst [vmem:[%s252 + $0xf8] sm:$0xff] %v315
                $region52: #{tpu_custom_call.1} parent=46 // loop_footer
                  %s250 = sadd.s32 1, %s246
                $region53: #{tpu_custom_call.1} parent=46 // loop_footer_branch
                  %245 = sbr.rel target = $region49
                $region54: #{tpu_custom_call.1} parent=46 // loop_exit
                  _
              $region47: #{tpu_custom_call.1} parent=31 // pred_fallthru
                _
              // Predicated region
              $region55: #{tpu_custom_call.1} parent=31 // pred_check
                _
              $region56: #{tpu_custom_call.1} parent=31 // pred_check_branch
                %318 = sbr.rel target = $region58
              $region57: #{tpu_custom_call.1} parent=31 // pred_region
                _
              $region58: #{tpu_custom_call.1} parent=31 // pred_fallthru
                _
            $region32: #{tpu_custom_call.1} parent=27 // pred_fallthru
              _
            // Predicated region
            $region33: #{tpu_custom_call.1} parent=27 // pred_check
              _
            $region34: #{tpu_custom_call.1} parent=27 // pred_check_branch
              %168 = sbr.rel target = $region36
            $region35: #{tpu_custom_call.1} parent=27 // pred_region
              %s170 = ssub.s32 256, 1
              loop: start=0, step=1, limit=1
              $region37: #{tpu_custom_call.1} parent=35 // loop_pre_header
                _
              $region38: #{tpu_custom_call.1} parent=35 // loop_header
                %s172 = sphi 0, %s176
                %p173 = scmp.ge.s32.totalorder %s172, 1
                %s177 = sphi %s162, %s162
                %s178 = sphi %s159, %s159
              $region39: #{tpu_custom_call.1} parent=35 // loop_header_branch
                %175 = sbr.rel (%p173) target = $region43
              $region40: #{tpu_custom_call.1} parent=35 // loop_body
                %v179 = vld [vmem:[%s177] sm:%s170]
                %180 = vst [vmem:[%s178] sm:%s170] %v179
                %v181 = vld [vmem:[%s177 + $0x8] sm:%s170]
                %182 = vst [vmem:[%s178 + $0x8] sm:%s170] %v181
                %v183 = vld [vmem:[%s177 + $0x10] sm:%s170]
                %184 = vst [vmem:[%s178 + $0x10] sm:%s170] %v183
                %v185 = vld [vmem:[%s177 + $0x18] sm:%s170]
                %186 = vst [vmem:[%s178 + $0x18] sm:%s170] %v185
                %v187 = vld [vmem:[%s177 + $0x20] sm:%s170]
                %188 = vst [vmem:[%s178 + $0x20] sm:%s170] %v187
                %v189 = vld [vmem:[%s177 + $0x28] sm:%s170]
                %190 = vst [vmem:[%s178 + $0x28] sm:%s170] %v189
                %v191 = vld [vmem:[%s177 + $0x30] sm:%s170]
                %192 = vst [vmem:[%s178 + $0x30] sm:%s170] %v191
                %v193 = vld [vmem:[%s177 + $0x38] sm:%s170]
                %194 = vst [vmem:[%s178 + $0x38] sm:%s170] %v193
                %v195 = vld [vmem:[%s177 + $0x80] sm:%s170]
                %196 = vst [vmem:[%s178 + $0x40] sm:%s170] %v195
                %v197 = vld [vmem:[%s177 + $0x88] sm:%s170]
                %198 = vst [vmem:[%s178 + $0x48] sm:%s170] %v197
                %v199 = vld [vmem:[%s177 + $0x90] sm:%s170]
                %200 = vst [vmem:[%s178 + $0x50] sm:%s170] %v199
                %v201 = vld [vmem:[%s177 + $0x98] sm:%s170]
                %202 = vst [vmem:[%s178 + $0x58] sm:%s170] %v201
                %v203 = vld [vmem:[%s177 + $0xa0] sm:%s170]
                %204 = vst [vmem:[%s178 + $0x60] sm:%s170] %v203
                %v205 = vld [vmem:[%s177 + $0xa8] sm:%s170]
                %206 = vst [vmem:[%s178 + $0x68] sm:%s170] %v205
                %v207 = vld [vmem:[%s177 + $0xb0] sm:%s170]
                %208 = vst [vmem:[%s178 + $0x70] sm:%s170] %v207
                %v209 = vld [vmem:[%s177 + $0xb8] sm:%s170]
                %210 = vst [vmem:[%s178 + $0x78] sm:%s170] %v209
                %v211 = vld [vmem:[%s177 + $0x100] sm:%s170]
                %212 = vst [vmem:[%s178 + $0x80] sm:%s170] %v211
                %v213 = vld [vmem:[%s177 + $0x108] sm:%s170]
                %214 = vst [vmem:[%s178 + $0x88] sm:%s170] %v213
                %v215 = vld [vmem:[%s177 + $0x110] sm:%s170]
                %216 = vst [vmem:[%s178 + $0x90] sm:%s170] %v215
                %v217 = vld [vmem:[%s177 + $0x118] sm:%s170]
                %218 = vst [vmem:[%s178 + $0x98] sm:%s170] %v217
                %v219 = vld [vmem:[%s177 + $0x120] sm:%s170]
                %220 = vst [vmem:[%s178 + $0xa0] sm:%s170] %v219
                %v221 = vld [vmem:[%s177 + $0x128] sm:%s170]
                %222 = vst [vmem:[%s178 + $0xa8] sm:%s170] %v221
                %v223 = vld [vmem:[%s177 + $0x130] sm:%s170]
                %224 = vst [vmem:[%s178 + $0xb0] sm:%s170] %v223
                %v225 = vld [vmem:[%s177 + $0x138] sm:%s170]
                %226 = vst [vmem:[%s178 + $0xb8] sm:%s170] %v225
                %v227 = vld [vmem:[%s177 + $0x180] sm:%s170]
                %228 = vst [vmem:[%s178 + $0xc0] sm:%s170] %v227
                %v229 = vld [vmem:[%s177 + $0x188] sm:%s170]
                %230 = vst [vmem:[%s178 + $0xc8] sm:%s170] %v229
                %v231 = vld [vmem:[%s177 + $0x190] sm:%s170]
                %232 = vst [vmem:[%s178 + $0xd0] sm:%s170] %v231
                %v233 = vld [vmem:[%s177 + $0x198] sm:%s170]
                %234 = vst [vmem:[%s178 + $0xd8] sm:%s170] %v233
                %v235 = vld [vmem:[%s177 + $0x1a0] sm:%s170]
                %236 = vst [vmem:[%s178 + $0xe0] sm:%s170] %v235
                %v237 = vld [vmem:[%s177 + $0x1a8] sm:%s170]
                %238 = vst [vmem:[%s178 + $0xe8] sm:%s170] %v237
                %v239 = vld [vmem:[%s177 + $0x1b0] sm:%s170]
                %240 = vst [vmem:[%s178 + $0xf0] sm:%s170] %v239
                %v241 = vld [vmem:[%s177 + $0x1b8] sm:%s170]
                %242 = vst [vmem:[%s178 + $0xf8] sm:%s170] %v241
              $region41: #{tpu_custom_call.1} parent=35 // loop_footer
                %s176 = sadd.s32 1, %s172
              $region42: #{tpu_custom_call.1} parent=35 // loop_footer_branch
                %171 = sbr.rel target = $region38
              $region43: #{tpu_custom_call.1} parent=35 // loop_exit
                _
            $region36: #{tpu_custom_call.1} parent=27 // pred_fallthru
              _
          $region28: #{tpu_custom_call.1} parent=23 // pred_fallthru
            _
          %319 = vnop
        $region24: #{tpu_custom_call.1} parent=19 // pred_fallthru
          _
      $region20: #{tpu_custom_call.1} parent=5 // pred_fallthru
        _
      %p320 = scmp.le.s32.totalorder 1, %s16
      %p321 = scmp.lt.s32.totalorder %s16, 3
      %p322 = pnand %p320, %p321
      %p323 = pneg %p322
      // Predicated region
      $region59: #{tpu_custom_call.1} parent=5 // pred_check
        _
      $region60: #{tpu_custom_call.1} parent=5 // pred_check_branch
        %325 = sbr.rel (%p322) target = $region62
      $region61: #{tpu_custom_call.1} parent=5 // pred_region
        %s326 = ssub.s32 %s16, 1
        %s327 = sand.u32 %s41, 1
        %s328 = sand.u32 %s41, 1
        %s329 = smul.addr %s328, 256
        %s330 = scalar_lea.vmem [#allocation4], %s329
        // Predicated region
        $region63: #{tpu_custom_call.1} parent=61 // pred_check
          %p331 = pneg %p54
        $region64: #{tpu_custom_call.1} parent=61 // pred_check_branch
          %333 = sbr.rel (%p331) target = $region66
        $region65: #{tpu_custom_call.1} parent=61 // pred_region
          _
        $region66: #{tpu_custom_call.1} parent=61 // pred_fallthru
          _
        %s334 = sand.u32 %s41, 1
        %s335 = sand.u32 %s41, 1
        %s336 = smul.addr %s335, 256
        %s337 = scalar_lea.vmem [#allocation4], %s336
        %p338 = pneg %p54
        %p339 = pneg %p51
        %p340 = pneg %p75
        %p341 = pneg %p72
        %p342 = pneg %p103
        %p343 = pneg %p100
        %s344 = sand.u32 %s90, 1
        %s345 = scalar_lea.sflag [#allocation6], %s344
        %s346 = sand.u32 %s90, 1
        %s347 = smul.addr %s346, 64
        %s348 = scalar_lea.vmem [#allocation5], %s347
        %p349 = pneg %p131
        %p350 = pneg %p128
        %s351 = sand.u32 %s118, 1
        %s352 = scalar_lea.sflag [#allocation8], %s351
        %s353 = sand.u32 %s118, 1
        %s354 = smul.addr %s353, 2
        %s355 = scalar_lea.vmem [#allocation7], %s354
        %s356 = sadd.s32 %s25, %s26
        %s357 = smul.u32 8, %s356
        %s358 = sadd.s32 %s25, %s26
        %p359 = scmp.eq.s32.totalorder %s26, 0
        // Predicated region
        $region67: #{tpu_custom_call.1} parent=61 // pred_check
          %p360 = pneg %p359
        $region68: #{tpu_custom_call.1} parent=61 // pred_check_branch
          %362 = sbr.rel (%p360) target = $region70
        $region69: #{tpu_custom_call.1} parent=61 // pred_region
          %v363 = vld [vmem:[%s330] sm:$0xff]
          %v364 = vld [vmem:[%s330 + $0x8] sm:$0xff]
          %v365 = vld [vmem:[%s330 + $0x10] sm:$0xff]
          %v366 = vld [vmem:[%s330 + $0x18] sm:$0xff]
          %v367 = vld [vmem:[%s330 + $0x20] sm:$0xff]
          %v368 = vld [vmem:[%s330 + $0x28] sm:$0xff]
          %v369 = vld [vmem:[%s330 + $0x30] sm:$0xff]
          %v370 = vld [vmem:[%s330 + $0x38] sm:$0xff]
          %s371 = scalar_lea.vmem %s330, 64 [#allocation4]
          %v372 = vld [vmem:[%s371] sm:$0xff]
          %v373 = vld [vmem:[%s371 + $0x8] sm:$0xff]
          %v374 = vld [vmem:[%s371 + $0x10] sm:$0xff]
          %v375 = vld [vmem:[%s371 + $0x18] sm:$0xff]
          %v376 = vld [vmem:[%s371 + $0x20] sm:$0xff]
          %v377 = vld [vmem:[%s371 + $0x28] sm:$0xff]
          %v378 = vld [vmem:[%s371 + $0x30] sm:$0xff]
          %v379 = vld [vmem:[%s371 + $0x38] sm:$0xff]
          %v380 = vmax.f32 %v363, %v372
          %v381 = vmax.f32 %v364, %v373
          %v382 = vmax.f32 %v365, %v374
          %v383 = vmax.f32 %v366, %v375
          %v384 = vmax.f32 %v367, %v376
          %v385 = vmax.f32 %v368, %v377
          %v386 = vmax.f32 %v369, %v378
          %v387 = vmax.f32 %v370, %v379
          %s388 = scalar_lea.vmem %s330, 128 [#allocation4]
          %v389 = vld [vmem:[%s388] sm:$0xff]
          %v390 = vld [vmem:[%s388 + $0x8] sm:$0xff]
          %v391 = vld [vmem:[%s388 + $0x10] sm:$0xff]
          %v392 = vld [vmem:[%s388 + $0x18] sm:$0xff]
          %v393 = vld [vmem:[%s388 + $0x20] sm:$0xff]
          %v394 = vld [vmem:[%s388 + $0x28] sm:$0xff]
          %v395 = vld [vmem:[%s388 + $0x30] sm:$0xff]
          %v396 = vld [vmem:[%s388 + $0x38] sm:$0xff]
          %s397 = scalar_lea.vmem %s330, 192 [#allocation4]
          %v398 = vld [vmem:[%s397] sm:$0xff]
          %v399 = vld [vmem:[%s397 + $0x8] sm:$0xff]
          %v400 = vld [vmem:[%s397 + $0x10] sm:$0xff]
          %v401 = vld [vmem:[%s397 + $0x18] sm:$0xff]
          %v402 = vld [vmem:[%s397 + $0x20] sm:$0xff]
          %v403 = vld [vmem:[%s397 + $0x28] sm:$0xff]
          %v404 = vld [vmem:[%s397 + $0x30] sm:$0xff]
          %v405 = vld [vmem:[%s397 + $0x38] sm:$0xff]
          %v406 = vmax.f32 %v389, %v398
          %v407 = vmax.f32 %v390, %v399
          %v408 = vmax.f32 %v391, %v400
          %v409 = vmax.f32 %v392, %v401
          %v410 = vmax.f32 %v393, %v402
          %v411 = vmax.f32 %v394, %v403
          %v412 = vmax.f32 %v395, %v404
          %v413 = vmax.f32 %v396, %v405
          %v414 = vmax.f32 %v380, %v406
          %v415 = vmax.f32 %v381, %v407
          %v416 = vmax.f32 %v382, %v408
          %v417 = vmax.f32 %v383, %v409
          %v418 = vmax.f32 %v384, %v410
          %v419 = vmax.f32 %v385, %v411
          %v420 = vmax.f32 %v386, %v412
          %v421 = vmax.f32 %v387, %v413
          %vm422 = vcmask 31744
          %423 = vst.msk [vmem:[#allocation2] sm:$0xff] %vm422, 0.0
          %vm424 = vcmask 25600
          %425 = vst.msk [vmem:[#allocation2 + $0x8] sm:$0x3] %vm424, 0.0
          %s426 = scalar_lea.vmem [#allocation2], 144
          %427 = vst.msk [vmem:[%s426] sm:$0xff] %vm422, 0.0
          %428 = vst.msk [vmem:[%s426 + $0x8] sm:$0x3] %vm424, 0.0
          %vm429 = vcmask 24576
          %430 = vst.msk [vmem:[#allocation2] sm:$0x1] %vm429, 0.0
          %431 = vst.msk [vmem:[#allocation2 + $0x10] sm:$0x1] %vm429, 0.0
          %432 = vst.msk [vmem:[#allocation2 + $0x20] sm:$0x1] %vm429, 0.0
          %433 = vst.msk [vmem:[#allocation2 + $0x30] sm:$0x1] %vm429, 0.0
          %434 = vst.msk [vmem:[#allocation2 + $0x40] sm:$0x1] %vm429, 0.0
          %435 = vst.msk [vmem:[#allocation2 + $0x50] sm:$0x1] %vm429, 0.0
          %436 = vst.msk [vmem:[#allocation2 + $0x60] sm:$0x1] %vm429, 0.0
          %437 = vst.msk [vmem:[#allocation2 + $0x70] sm:$0x1] %vm429, 0.0
          %438 = vst.msk [vmem:[#allocation2 + $0x80] sm:$0x1] %vm429, 0.0
          %439 = vst.msk [vmem:[#allocation2 + $0x90] sm:$0x1] %vm429, 0.0
          %440 = vst.msk [vmem:[#allocation2 + $0x9] sm:$0x1] %vm429, 0.0
          %441 = vst.msk [vmem:[#allocation2 + $0x19] sm:$0x1] %vm429, 0.0
          %442 = vst.msk [vmem:[#allocation2 + $0x29] sm:$0x1] %vm429, 0.0
          %443 = vst.msk [vmem:[#allocation2 + $0x39] sm:$0x1] %vm429, 0.0
          %444 = vst.msk [vmem:[#allocation2 + $0x49] sm:$0x1] %vm429, 0.0
          %445 = vst.msk [vmem:[#allocation2 + $0x59] sm:$0x1] %vm429, 0.0
          %446 = vst.msk [vmem:[#allocation2 + $0x69] sm:$0x1] %vm429, 0.0
          %447 = vst.msk [vmem:[#allocation2 + $0x79] sm:$0x1] %vm429, 0.0
          %448 = vst.msk [vmem:[#allocation2 + $0x89] sm:$0x1] %vm429, 0.0
          %449 = vst.msk [vmem:[#allocation2 + $0x99] sm:$0x1] %vm429, 0.0
          %s450 = scalar_lea.vmem [#allocation2], 16
          %451 = vst.msk [vmem:[%s450 + $0x1] sm:$0xff] %vm422, %v414
          %452 = vst.msk [vmem:[%s450 + $0x11] sm:$0xff] %vm422, %v415
          %453 = vst.msk [vmem:[%s450 + $0x21] sm:$0xff] %vm422, %v416
          %454 = vst.msk [vmem:[%s450 + $0x31] sm:$0xff] %vm422, %v417
          %455 = vst.msk [vmem:[%s450 + $0x41] sm:$0xff] %vm422, %v418
          %456 = vst.msk [vmem:[%s450 + $0x51] sm:$0xff] %vm422, %v419
          %457 = vst.msk [vmem:[%s450 + $0x61] sm:$0xff] %vm422, %v420
          %458 = vst.msk [vmem:[%s450 + $0x71] sm:$0xff] %vm422, %v421
        $region70: #{tpu_custom_call.1} parent=61 // pred_fallthru
          _
        %s459 = smul.u32 %s26, 8
        %s460 = smul.u32 %s459, 16
        %s461 = scalar_lea.vmem [#allocation2], %s460
        %v462 = vld [vmem:[%s461] sm:$0xff]
        %v463 = vld [vmem:[%s461 + $0x8] sm:$0x3]
        %v464 = vld [vmem:[%s461 + $0x10] sm:$0xff]
        %v465 = vld [vmem:[%s461 + $0x18] sm:$0x3]
        %v466 = vld [vmem:[%s461 + $0x20] sm:$0xff]
        %v467 = vld [vmem:[%s461 + $0x28] sm:$0x3]
        %v468 = vld [vmem:[%s461 + $0x30] sm:$0xff]
        %v469 = vld [vmem:[%s461 + $0x38] sm:$0x3]
        %v470 = vld [vmem:[%s461 + $0x40] sm:$0xff]
        %v471 = vld [vmem:[%s461 + $0x48] sm:$0x3]
        %v472 = vld [vmem:[%s461 + $0x50] sm:$0xff]
        %v473 = vld [vmem:[%s461 + $0x58] sm:$0x3]
        %v474 = vld [vmem:[%s461 + $0x60] sm:$0xff]
        %v475 = vld [vmem:[%s461 + $0x68] sm:$0x3]
        %v476 = vld [vmem:[%s461 + $0x70] sm:$0xff]
        %v477 = vld [vmem:[%s461 + $0x78] sm:$0x3]
        %vm478 = vcmask 31744
        %479 = vst.msk [vmem:[#allocation3] sm:$0xff] %vm478, %v462
        %480 = vst.msk [vmem:[#allocation3 + $0x8] sm:$0xff] %vm478, %v464
        %481 = vst.msk [vmem:[#allocation3 + $0x10] sm:$0xff] %vm478, %v466
        %482 = vst.msk [vmem:[#allocation3 + $0x18] sm:$0xff] %vm478, %v468
        %483 = vst.msk [vmem:[#allocation3 + $0x20] sm:$0xff] %vm478, %v470
        %484 = vst.msk [vmem:[#allocation3 + $0x28] sm:$0xff] %vm478, %v472
        %485 = vst.msk [vmem:[#allocation3 + $0x30] sm:$0xff] %vm478, %v474
        %486 = vst.msk [vmem:[#allocation3 + $0x38] sm:$0xff] %vm478, %v476
        %vm503 = vcmask 1046528
        %v504 = vrot.slane %v462, 1
        %v505 = vrot.slane %v463, 1
        %v506 = vsel %vm503, %v504, %v505
        %v507 = vrot.slane %v464, 1
        %v508 = vrot.slane %v465, 1
        %v509 = vsel %vm503, %v507, %v508
        %v510 = vrot.slane %v466, 1
        %v511 = vrot.slane %v467, 1
        %v512 = vsel %vm503, %v510, %v511
        %v513 = vrot.slane %v468, 1
        %v514 = vrot.slane %v469, 1
        %v515 = vsel %vm503, %v513, %v514
        %v516 = vrot.slane %v470, 1
        %v517 = vrot.slane %v471, 1
        %v518 = vsel %vm503, %v516, %v517
        %v519 = vrot.slane %v472, 1
        %v520 = vrot.slane %v473, 1
        %v521 = vsel %vm503, %v519, %v520
        %v522 = vrot.slane %v474, 1
        %v523 = vrot.slane %v475, 1
        %v524 = vsel %vm503, %v522, %v523
        %v525 = vrot.slane %v476, 1
        %v526 = vrot.slane %v477, 1
        %v527 = vsel %vm503, %v525, %v526
        %528 = vrot.lane.b32.xlu0 %v506, 4
        %v529 = vpop.permute.xlu0 %528
        %530 = vrot.lane.b32.xlu0 %v509, 4
        %v531 = vpop.permute.xlu0 %530
        %532 = vrot.lane.b32.xlu0 %v512, 4
        %v533 = vpop.permute.xlu0 %532
        %534 = vrot.lane.b32.xlu0 %v515, 4
        %v535 = vpop.permute.xlu0 %534
        %536 = vrot.lane.b32.xlu0 %v518, 4
        %v537 = vpop.permute.xlu0 %536
        %538 = vrot.lane.b32.xlu0 %v521, 4
        %v539 = vpop.permute.xlu0 %538
        %540 = vrot.lane.b32.xlu0 %v524, 4
        %v541 = vpop.permute.xlu0 %540
        %542 = vrot.lane.b32.xlu0 %v527, 4
        %v543 = vpop.permute.xlu0 %542
        %vm552 = vcmask 64544
        %553 = vst.msk [vmem:[#allocation3] sm:$0xff] %vm552, %v529
        %554 = vst.msk [vmem:[#allocation3 + $0x8] sm:$0xff] %vm552, %v531
        %555 = vst.msk [vmem:[#allocation3 + $0x10] sm:$0xff] %vm552, %v533
        %556 = vst.msk [vmem:[#allocation3 + $0x18] sm:$0xff] %vm552, %v535
        %557 = vst.msk [vmem:[#allocation3 + $0x20] sm:$0xff] %vm552, %v537
        %558 = vst.msk [vmem:[#allocation3 + $0x28] sm:$0xff] %vm552, %v539
        %559 = vst.msk [vmem:[#allocation3 + $0x30] sm:$0xff] %vm552, %v541
        %560 = vst.msk [vmem:[#allocation3 + $0x38] sm:$0xff] %vm552, %v543
        %vm561 = vcmask 1045504
        %v562 = vrot.slane %v462, 2
        %v563 = vrot.slane %v463, 2
        %v564 = vsel %vm561, %v562, %v563
        %v565 = vrot.slane %v464, 2
        %v566 = vrot.slane %v465, 2
        %v567 = vsel %vm561, %v565, %v566
        %v568 = vrot.slane %v466, 2
        %v569 = vrot.slane %v467, 2
        %v570 = vsel %vm561, %v568, %v569
        %v571 = vrot.slane %v468, 2
        %v572 = vrot.slane %v469, 2
        %v573 = vsel %vm561, %v571, %v572
        %v574 = vrot.slane %v470, 2
        %v575 = vrot.slane %v471, 2
        %v576 = vsel %vm561, %v574, %v575
        %v577 = vrot.slane %v472, 2
        %v578 = vrot.slane %v473, 2
        %v579 = vsel %vm561, %v577, %v578
        %v580 = vrot.slane %v474, 2
        %v581 = vrot.slane %v475, 2
        %v582 = vsel %vm561, %v580, %v581
        %v583 = vrot.slane %v476, 2
        %v584 = vrot.slane %v477, 2
        %v585 = vsel %vm561, %v583, %v584
        %586 = vrot.lane.b32.xlu0 %v564, 8
        %v587 = vpop.permute.xlu0 %586
        %588 = vrot.lane.b32.xlu0 %v567, 8
        %v589 = vpop.permute.xlu0 %588
        %590 = vrot.lane.b32.xlu0 %v570, 8
        %v591 = vpop.permute.xlu0 %590
        %592 = vrot.lane.b32.xlu0 %v573, 8
        %v593 = vpop.permute.xlu0 %592
        %594 = vrot.lane.b32.xlu0 %v576, 8
        %v595 = vpop.permute.xlu0 %594
        %596 = vrot.lane.b32.xlu0 %v579, 8
        %v597 = vpop.permute.xlu0 %596
        %598 = vrot.lane.b32.xlu0 %v582, 8
        %v599 = vpop.permute.xlu0 %598
        %600 = vrot.lane.b32.xlu0 %v585, 8
        %v601 = vpop.permute.xlu0 %600
        %vm610 = vcmask 97344
        %611 = vst.msk [vmem:[#allocation3] sm:$0xff] %vm610, %v587
        %612 = vst.msk [vmem:[#allocation3 + $0x8] sm:$0xff] %vm610, %v589
        %613 = vst.msk [vmem:[#allocation3 + $0x10] sm:$0xff] %vm610, %v591
        %614 = vst.msk [vmem:[#allocation3 + $0x18] sm:$0xff] %vm610, %v593
        %615 = vst.msk [vmem:[#allocation3 + $0x20] sm:$0xff] %vm610, %v595
        %616 = vst.msk [vmem:[#allocation3 + $0x28] sm:$0xff] %vm610, %v597
        %617 = vst.msk [vmem:[#allocation3 + $0x30] sm:$0xff] %vm610, %v599
        %618 = vst.msk [vmem:[#allocation3 + $0x38] sm:$0xff] %vm610, %v601
        %s619 = sadd.s32 %s459, 1
        %s620 = smul.u32 %s619, 16
        %s621 = scalar_lea.vmem [#allocation2], %s620
        %v622 = vld [vmem:[%s621] sm:$0xff]
        %v623 = vld [vmem:[%s621 + $0x8] sm:$0x3]
        %v624 = vld [vmem:[%s621 + $0x10] sm:$0xff]
        %v625 = vld [vmem:[%s621 + $0x18] sm:$0x3]
        %v626 = vld [vmem:[%s621 + $0x20] sm:$0xff]
        %v627 = vld [vmem:[%s621 + $0x28] sm:$0x3]
        %v628 = vld [vmem:[%s621 + $0x30] sm:$0xff]
        %v629 = vld [vmem:[%s621 + $0x38] sm:$0x3]
        %v630 = vld [vmem:[%s621 + $0x40] sm:$0xff]
        %v631 = vld [vmem:[%s621 + $0x48] sm:$0x3]
        %v632 = vld [vmem:[%s621 + $0x50] sm:$0xff]
        %v633 = vld [vmem:[%s621 + $0x58] sm:$0x3]
        %v634 = vld [vmem:[%s621 + $0x60] sm:$0xff]
        %v635 = vld [vmem:[%s621 + $0x68] sm:$0x3]
        %v636 = vld [vmem:[%s621 + $0x70] sm:$0xff]
        %v637 = vld [vmem:[%s621 + $0x78] sm:$0x3]
        %646 = vrot.lane.b32.xlu0 %v622, 12
        %v647 = vpop.permute.xlu0 %646
        %648 = vrot.lane.b32.xlu0 %v624, 12
        %v649 = vpop.permute.xlu0 %648
        %650 = vrot.lane.b32.xlu0 %v626, 12
        %v651 = vpop.permute.xlu0 %650
        %652 = vrot.lane.b32.xlu0 %v628, 12
        %v653 = vpop.permute.xlu0 %652
        %654 = vrot.lane.b32.xlu0 %v630, 12
        %v655 = vpop.permute.xlu0 %654
        %656 = vrot.lane.b32.xlu0 %v632, 12
        %v657 = vpop.permute.xlu0 %656
        %658 = vrot.lane.b32.xlu0 %v634, 12
        %v659 = vpop.permute.xlu0 %658
        %660 = vrot.lane.b32.xlu0 %v636, 12
        %v661 = vpop.permute.xlu0 %660
        %vm670 = vcmask 130144
        %671 = vst.msk [vmem:[#allocation3] sm:$0xff] %vm670, %v647
        %672 = vst.msk [vmem:[#allocation3 + $0x8] sm:$0xff] %vm670, %v649
        %673 = vst.msk [vmem:[#allocation3 + $0x10] sm:$0xff] %vm670, %v651
        %674 = vst.msk [vmem:[#allocation3 + $0x18] sm:$0xff] %vm670, %v653
        %675 = vst.msk [vmem:[#allocation3 + $0x20] sm:$0xff] %vm670, %v655
        %676 = vst.msk [vmem:[#allocation3 + $0x28] sm:$0xff] %vm670, %v657
        %677 = vst.msk [vmem:[#allocation3 + $0x30] sm:$0xff] %vm670, %v659
        %678 = vst.msk [vmem:[#allocation3 + $0x38] sm:$0xff] %vm670, %v661
        %v687 = vrot.slane %v622, 1
        %v688 = vrot.slane %v623, 1
        %v689 = vsel %vm503, %v687, %v688
        %v690 = vrot.slane %v624, 1
        %v691 = vrot.slane %v625, 1
        %v692 = vsel %vm503, %v690, %v691
        %v693 = vrot.slane %v626, 1
        %v694 = vrot.slane %v627, 1
        %v695 = vsel %vm503, %v693, %v694
        %v696 = vrot.slane %v628, 1
        %v697 = vrot.slane %v629, 1
        %v698 = vsel %vm503, %v696, %v697
        %v699 = vrot.slane %v630, 1
        %v700 = vrot.slane %v631, 1
        %v701 = vsel %vm503, %v699, %v700
        %v702 = vrot.slane %v632, 1
        %v703 = vrot.slane %v633, 1
        %v704 = vsel %vm503, %v702, %v703
        %v705 = vrot.slane %v634, 1
        %v706 = vrot.slane %v635, 1
        %v707 = vsel %vm503, %v705, %v706
        %v708 = vrot.slane %v636, 1
        %v709 = vrot.slane %v637, 1
        %v710 = vsel %vm503, %v708, %v709
        %711 = vrot.lane.b32.xlu0 %v689, 16
        %v712 = vpop.permute.xlu0 %711
        %713 = vrot.lane.b32.xlu0 %v692, 16
        %v714 = vpop.permute.xlu0 %713
        %715 = vrot.lane.b32.xlu0 %v695, 16
        %v716 = vpop.permute.xlu0 %715
        %717 = vrot.lane.b32.xlu0 %v698, 16
        %v718 = vpop.permute.xlu0 %717
        %719 = vrot.lane.b32.xlu0 %v701, 16
        %v720 = vpop.permute.xlu0 %719
        %721 = vrot.lane.b32.xlu0 %v704, 16
        %v722 = vpop.permute.xlu0 %721
        %723 = vrot.lane.b32.xlu0 %v707, 16
        %v724 = vpop.permute.xlu0 %723
        %725 = vrot.lane.b32.xlu0 %v710, 16
        %v726 = vpop.permute.xlu0 %725
        %vm735 = vcmask 162944
        %736 = vst.msk [vmem:[#allocation3] sm:$0xff] %vm735, %v712
        %737 = vst.msk [vmem:[#allocation3 + $0x8] sm:$0xff] %vm735, %v714
        %738 = vst.msk [vmem:[#allocation3 + $0x10] sm:$0xff] %vm735, %v716
        %739 = vst.msk [vmem:[#allocation3 + $0x18] sm:$0xff] %vm735, %v718
        %740 = vst.msk [vmem:[#allocation3 + $0x20] sm:$0xff] %vm735, %v720
        %741 = vst.msk [vmem:[#allocation3 + $0x28] sm:$0xff] %vm735, %v722
        %742 = vst.msk [vmem:[#allocation3 + $0x30] sm:$0xff] %vm735, %v724
        %743 = vst.msk [vmem:[#allocation3 + $0x38] sm:$0xff] %vm735, %v726
        %v744 = vrot.slane %v622, 2
        %v745 = vrot.slane %v623, 2
        %v746 = vsel %vm561, %v744, %v745
        %v747 = vrot.slane %v624, 2
        %v748 = vrot.slane %v625, 2
        %v749 = vsel %vm561, %v747, %v748
        %v750 = vrot.slane %v626, 2
        %v751 = vrot.slane %v627, 2
        %v752 = vsel %vm561, %v750, %v751
        %v753 = vrot.slane %v628, 2
        %v754 = vrot.slane %v629, 2
        %v755 = vsel %vm561, %v753, %v754
        %v756 = vrot.slane %v630, 2
        %v757 = vrot.slane %v631, 2
        %v758 = vsel %vm561, %v756, %v757
        %v759 = vrot.slane %v632, 2
        %v760 = vrot.slane %v633, 2
        %v761 = vsel %vm561, %v759, %v760
        %v762 = vrot.slane %v634, 2
        %v763 = vrot.slane %v635, 2
        %v764 = vsel %vm561, %v762, %v763
        %v765 = vrot.slane %v636, 2
        %v766 = vrot.slane %v637, 2
        %v767 = vsel %vm561, %v765, %v766
        %768 = vrot.lane.b32.xlu0 %v746, 20
        %v769 = vpop.permute.xlu0 %768
        %770 = vrot.lane.b32.xlu0 %v749, 20
        %v771 = vpop.permute.xlu0 %770
        %772 = vrot.lane.b32.xlu0 %v752, 20
        %v773 = vpop.permute.xlu0 %772
        %774 = vrot.lane.b32.xlu0 %v755, 20
        %v775 = vpop.permute.xlu0 %774
        %776 = vrot.lane.b32.xlu0 %v758, 20
        %v777 = vpop.permute.xlu0 %776
        %778 = vrot.lane.b32.xlu0 %v761, 20
        %v779 = vpop.permute.xlu0 %778
        %780 = vrot.lane.b32.xlu0 %v764, 20
        %v781 = vpop.permute.xlu0 %780
        %782 = vrot.lane.b32.xlu0 %v767, 20
        %v783 = vpop.permute.xlu0 %782
        %vm792 = vcmask 195744
        %793 = vst.msk [vmem:[#allocation3] sm:$0xff] %vm792, %v769
        %794 = vst.msk [vmem:[#allocation3 + $0x8] sm:$0xff] %vm792, %v771
        %795 = vst.msk [vmem:[#allocation3 + $0x10] sm:$0xff] %vm792, %v773
        %796 = vst.msk [vmem:[#allocation3 + $0x18] sm:$0xff] %vm792, %v775
        %797 = vst.msk [vmem:[#allocation3 + $0x20] sm:$0xff] %vm792, %v777
        %798 = vst.msk [vmem:[#allocation3 + $0x28] sm:$0xff] %vm792, %v779
        %799 = vst.msk [vmem:[#allocation3 + $0x30] sm:$0xff] %vm792, %v781
        %800 = vst.msk [vmem:[#allocation3 + $0x38] sm:$0xff] %vm792, %v783
        %s801 = sadd.s32 %s459, 2
        %s802 = smul.u32 %s801, 16
        %s803 = scalar_lea.vmem [#allocation2], %s802
        %v804 = vld [vmem:[%s803] sm:$0xff]
        %v805 = vld [vmem:[%s803 + $0x8] sm:$0x3]
        %v806 = vld [vmem:[%s803 + $0x10] sm:$0xff]
        %v807 = vld [vmem:[%s803 + $0x18] sm:$0x3]
        %v808 = vld [vmem:[%s803 + $0x20] sm:$0xff]
        %v809 = vld [vmem:[%s803 + $0x28] sm:$0x3]
        %v810 = vld [vmem:[%s803 + $0x30] sm:$0xff]
        %v811 = vld [vmem:[%s803 + $0x38] sm:$0x3]
        %v812 = vld [vmem:[%s803 + $0x40] sm:$0xff]
        %v813 = vld [vmem:[%s803 + $0x48] sm:$0x3]
        %v814 = vld [vmem:[%s803 + $0x50] sm:$0xff]
        %v815 = vld [vmem:[%s803 + $0x58] sm:$0x3]
        %v816 = vld [vmem:[%s803 + $0x60] sm:$0xff]
        %v817 = vld [vmem:[%s803 + $0x68] sm:$0x3]
        %v818 = vld [vmem:[%s803 + $0x70] sm:$0xff]
        %v819 = vld [vmem:[%s803 + $0x78] sm:$0x3]
        %828 = vrot.lane.b32.xlu0 %v804, 24
        %v829 = vpop.permute.xlu0 %828
        %830 = vrot.lane.b32.xlu0 %v806, 24
        %v831 = vpop.permute.xlu0 %830
        %832 = vrot.lane.b32.xlu0 %v808, 24
        %v833 = vpop.permute.xlu0 %832
        %834 = vrot.lane.b32.xlu0 %v810, 24
        %v835 = vpop.permute.xlu0 %834
        %836 = vrot.lane.b32.xlu0 %v812, 24
        %v837 = vpop.permute.xlu0 %836
        %838 = vrot.lane.b32.xlu0 %v814, 24
        %v839 = vpop.permute.xlu0 %838
        %840 = vrot.lane.b32.xlu0 %v816, 24
        %v841 = vpop.permute.xlu0 %840
        %842 = vrot.lane.b32.xlu0 %v818, 24
        %v843 = vpop.permute.xlu0 %842
        %vm852 = vcmask 228544
        %853 = vst.msk [vmem:[#allocation3] sm:$0xff] %vm852, %v829
        %854 = vst.msk [vmem:[#allocation3 + $0x8] sm:$0xff] %vm852, %v831
        %855 = vst.msk [vmem:[#allocation3 + $0x10] sm:$0xff] %vm852, %v833
        %856 = vst.msk [vmem:[#allocation3 + $0x18] sm:$0xff] %vm852, %v835
        %857 = vst.msk [vmem:[#allocation3 + $0x20] sm:$0xff] %vm852, %v837
        %858 = vst.msk [vmem:[#allocation3 + $0x28] sm:$0xff] %vm852, %v839
        %859 = vst.msk [vmem:[#allocation3 + $0x30] sm:$0xff] %vm852, %v841
        %860 = vst.msk [vmem:[#allocation3 + $0x38] sm:$0xff] %vm852, %v843
        %v869 = vrot.slane %v804, 1
        %v870 = vrot.slane %v805, 1
        %v871 = vsel %vm503, %v869, %v870
        %v872 = vrot.slane %v806, 1
        %v873 = vrot.slane %v807, 1
        %v874 = vsel %vm503, %v872, %v873
        %v875 = vrot.slane %v808, 1
        %v876 = vrot.slane %v809, 1
        %v877 = vsel %vm503, %v875, %v876
        %v878 = vrot.slane %v810, 1
        %v879 = vrot.slane %v811, 1
        %v880 = vsel %vm503, %v878, %v879
        %v881 = vrot.slane %v812, 1
        %v882 = vrot.slane %v813, 1
        %v883 = vsel %vm503, %v881, %v882
        %v884 = vrot.slane %v814, 1
        %v885 = vrot.slane %v815, 1
        %v886 = vsel %vm503, %v884, %v885
        %v887 = vrot.slane %v816, 1
        %v888 = vrot.slane %v817, 1
        %v889 = vsel %vm503, %v887, %v888
        %v890 = vrot.slane %v818, 1
        %v891 = vrot.slane %v819, 1
        %v892 = vsel %vm503, %v890, %v891
        %893 = vrot.lane.b32.xlu0 %v871, 28
        %v894 = vpop.permute.xlu0 %893
        %895 = vrot.lane.b32.xlu0 %v874, 28
        %v896 = vpop.permute.xlu0 %895
        %897 = vrot.lane.b32.xlu0 %v877, 28
        %v898 = vpop.permute.xlu0 %897
        %899 = vrot.lane.b32.xlu0 %v880, 28
        %v900 = vpop.permute.xlu0 %899
        %901 = vrot.lane.b32.xlu0 %v883, 28
        %v902 = vpop.permute.xlu0 %901
        %903 = vrot.lane.b32.xlu0 %v886, 28
        %v904 = vpop.permute.xlu0 %903
        %905 = vrot.lane.b32.xlu0 %v889, 28
        %v906 = vpop.permute.xlu0 %905
        %907 = vrot.lane.b32.xlu0 %v892, 28
        %v908 = vpop.permute.xlu0 %907
        %vm917 = vcmask 261344
        %918 = vst.msk [vmem:[#allocation3] sm:$0xff] %vm917, %v894
        %919 = vst.msk [vmem:[#allocation3 + $0x8] sm:$0xff] %vm917, %v896
        %920 = vst.msk [vmem:[#allocation3 + $0x10] sm:$0xff] %vm917, %v898
        %921 = vst.msk [vmem:[#allocation3 + $0x18] sm:$0xff] %vm917, %v900
        %922 = vst.msk [vmem:[#allocation3 + $0x20] sm:$0xff] %vm917, %v902
        %923 = vst.msk [vmem:[#allocation3 + $0x28] sm:$0xff] %vm917, %v904
        %924 = vst.msk [vmem:[#allocation3 + $0x30] sm:$0xff] %vm917, %v906
        %925 = vst.msk [vmem:[#allocation3 + $0x38] sm:$0xff] %vm917, %v908
        %v926 = vrot.slane %v804, 2
        %v927 = vrot.slane %v805, 2
        %v928 = vsel %vm561, %v926, %v927
        %v929 = vrot.slane %v806, 2
        %v930 = vrot.slane %v807, 2
        %v931 = vsel %vm561, %v929, %v930
        %v932 = vrot.slane %v808, 2
        %v933 = vrot.slane %v809, 2
        %v934 = vsel %vm561, %v932, %v933
        %v935 = vrot.slane %v810, 2
        %v936 = vrot.slane %v811, 2
        %v937 = vsel %vm561, %v935, %v936
        %v938 = vrot.slane %v812, 2
        %v939 = vrot.slane %v813, 2
        %v940 = vsel %vm561, %v938, %v939
        %v941 = vrot.slane %v814, 2
        %v942 = vrot.slane %v815, 2
        %v943 = vsel %vm561, %v941, %v942
        %v944 = vrot.slane %v816, 2
        %v945 = vrot.slane %v817, 2
        %v946 = vsel %vm561, %v944, %v945
        %v947 = vrot.slane %v818, 2
        %v948 = vrot.slane %v819, 2
        %v949 = vsel %vm561, %v947, %v948
        %950 = vrot.lane.b32.xlu0 %v928, 32
        %v951 = vpop.permute.xlu0 %950
        %952 = vrot.lane.b32.xlu0 %v931, 32
        %v953 = vpop.permute.xlu0 %952
        %954 = vrot.lane.b32.xlu0 %v934, 32
        %v955 = vpop.permute.xlu0 %954
        %956 = vrot.lane.b32.xlu0 %v937, 32
        %v957 = vpop.permute.xlu0 %956
        %958 = vrot.lane.b32.xlu0 %v940, 32
        %v959 = vpop.permute.xlu0 %958
        %960 = vrot.lane.b32.xlu0 %v943, 32
        %v961 = vpop.permute.xlu0 %960
        %962 = vrot.lane.b32.xlu0 %v946, 32
        %v963 = vpop.permute.xlu0 %962
        %964 = vrot.lane.b32.xlu0 %v949, 32
        %v965 = vpop.permute.xlu0 %964
        %vm974 = vcmask 294144
        %975 = vst.msk [vmem:[#allocation3] sm:$0xff] %vm974, %v951
        %976 = vst.msk [vmem:[#allocation3 + $0x8] sm:$0xff] %vm974, %v953
        %977 = vst.msk [vmem:[#allocation3 + $0x10] sm:$0xff] %vm974, %v955
        %978 = vst.msk [vmem:[#allocation3 + $0x18] sm:$0xff] %vm974, %v957
        %979 = vst.msk [vmem:[#allocation3 + $0x20] sm:$0xff] %vm974, %v959
        %980 = vst.msk [vmem:[#allocation3 + $0x28] sm:$0xff] %vm974, %v961
        %981 = vst.msk [vmem:[#allocation3 + $0x30] sm:$0xff] %vm974, %v963
        %982 = vst.msk [vmem:[#allocation3 + $0x38] sm:$0xff] %vm974, %v965
        %v983 = vld [vmem:[#allocation3] sm:$0xff]
        %v984 = vld [vmem:[#allocation3 + $0x8] sm:$0xff]
        %v985 = vld [vmem:[#allocation3 + $0x10] sm:$0xff]
        %v986 = vld [vmem:[#allocation3 + $0x18] sm:$0xff]
        %v987 = vld [vmem:[#allocation3 + $0x20] sm:$0xff]
        %v988 = vld [vmem:[#allocation3 + $0x28] sm:$0xff]
        %v989 = vld [vmem:[#allocation3 + $0x30] sm:$0xff]
        %v990 = vld [vmem:[#allocation3 + $0x38] sm:$0xff]
        %v991 = vld [vmem:[%s1] sm:$0xff]
        %v992 = vld [vmem:[%s1 + $0x8] sm:$0xff]
        %v993 = vld [vmem:[%s1 + $0x10] sm:$0xff]
        %v994 = vld [vmem:[%s1 + $0x18] sm:$0xff]
        %v995 = vld [vmem:[%s1 + $0x20] sm:$0xf]
        %vm996 = vcmask 293888
        %v998 = vsel %vm996, %v983, 0
        %v1001 = vsel %vm996, %v984, 0
        %v1004 = vsel %vm996, %v985, 0
        %v1007 = vsel %vm996, %v986, 0
        %v1010 = vsel %vm996, %v987, 0
        %v1013 = vsel %vm996, %v988, 0
        %v1016 = vsel %vm996, %v989, 0
        %v1019 = vsel %vm996, %v990, 0
        %vm1021 = vcmask 1043456
        %v1023 = vsel %vm1021, %v995, 0
        %1025 = vmatpush.msra.mxu0 0.0
        %1026 = vmatpush.msra.mxu0 0.0
        %1027 = vmatpush.msra.mxu0 0.0
        %1028 = vmatpush.msra.mxu0 0.0
        %1029 = vmatpush.msra.mxu0 0.0
        %1030 = vmatpush.msra.mxu0 0.0
        %1031 = vmatpush.msra.mxu0 0.0
        %1032 = vmatpush.msra.mxu0 0.0
        %1033 = vmatpush.msra.mxu0 0.0
        %1034 = vmatpush.msra.mxu0 0.0
        %1035 = vmatpush.msra.mxu0 0.0
        %1036 = vmatpush.msra.mxu0 %v1023
        %1037 = vmatpush.msra.mxu0 %v994
        %1038 = vmatpush.msra.mxu0 %v993
        %1039 = vmatpush.msra.mxu0 %v992
        %1040 = vmatpush.msra.mxu0 %v991
        %1041 = vmatmul.f32.gmra.mxu0 %v998
        %v1042 = vpop.f32.mrf.mxu0
        %v1043 = vadd.f32 0.0, %v1042
        %1044 = vmatmul.f32.gmra.mxu0 %v1001
        %v1045 = vpop.f32.mrf.mxu0
        %v1046 = vadd.f32 0.0, %v1045
        %1047 = vmatmul.f32.gmra.mxu0 %v1004
        %v1048 = vpop.f32.mrf.mxu0
        %v1049 = vadd.f32 0.0, %v1048
        %1050 = vmatmul.f32.gmra.mxu0 %v1007
        %v1051 = vpop.f32.mrf.mxu0
        %v1052 = vadd.f32 0.0, %v1051
        %1053 = vmatmul.f32.gmra.mxu0 %v1010
        %v1054 = vpop.f32.mrf.mxu0
        %v1055 = vadd.f32 0.0, %v1054
        %1056 = vmatmul.f32.gmra.mxu0 %v1013
        %v1057 = vpop.f32.mrf.mxu0
        %v1058 = vadd.f32 0.0, %v1057
        %1059 = vmatmul.f32.gmra.mxu0 %v1016
        %v1060 = vpop.f32.mrf.mxu0
        %v1061 = vadd.f32 0.0, %v1060
        %1062 = vmatmul.f32.gmra.mxu0 %v1019
        %v1063 = vpop.f32.mrf.mxu0
        %v1064 = vadd.f32 0.0, %v1063
        %1065 = vdwg.mxu0
        %1066 = vst [vmem:[%s348] sm:$0xff] %v1043
        %1067 = vst [vmem:[%s348 + $0x8] sm:$0xff] %v1046
        %1068 = vst [vmem:[%s348 + $0x10] sm:$0xff] %v1049
        %1069 = vst [vmem:[%s348 + $0x18] sm:$0xff] %v1052
        %1070 = vst [vmem:[%s348 + $0x20] sm:$0xff] %v1055
        %1071 = vst [vmem:[%s348 + $0x28] sm:$0xff] %v1058
        %1072 = vst [vmem:[%s348 + $0x30] sm:$0xff] %v1061
        %1073 = vst [vmem:[%s348 + $0x38] sm:$0xff] %v1064
        %v1074 = vadd.f32 %v1043, %v1046
        %v1075 = vadd.f32 %v1074, %v1049
        %v1076 = vadd.f32 %v1075, %v1052
        %v1077 = vadd.f32 %v1076, %v1055
        %v1078 = vadd.f32 %v1077, %v1058
        %v1079 = vadd.f32 %v1078, %v1061
        %v1080 = vadd.f32 %v1079, %v1064
        %v1081 = vrot.slane %v1080, 4
        %v1082 = vadd.f32 %v1080, %v1081
        %v1083 = vrot.slane %v1082, 2
        %v1084 = vadd.f32 %v1082, %v1083
        %v1085 = vrot.slane %v1084, 1
        %v1086 = vadd.f32 %v1084, %v1085
        %v1087 = vmul.f32 %v1086, 0.015625
        %v1088 = vsub.f32 %v1043, %v1087
        %v1089 = vsub.f32 %v1046, %v1087
        %v1090 = vsub.f32 %v1049, %v1087
        %v1091 = vsub.f32 %v1052, %v1087
        %v1092 = vsub.f32 %v1055, %v1087
        %v1093 = vsub.f32 %v1058, %v1087
        %v1094 = vsub.f32 %v1061, %v1087
        %v1095 = vsub.f32 %v1064, %v1087
        %v1096 = vmul.f32 %v1088, %v1088
        %v1097 = vmul.f32 %v1089, %v1089
        %v1098 = vmul.f32 %v1090, %v1090
        %v1099 = vmul.f32 %v1091, %v1091
        %v1100 = vmul.f32 %v1092, %v1092
        %v1101 = vmul.f32 %v1093, %v1093
        %v1102 = vmul.f32 %v1094, %v1094
        %v1103 = vmul.f32 %v1095, %v1095
        %v1104 = vadd.f32 %v1096, %v1097
        %v1105 = vadd.f32 %v1104, %v1098
        %v1106 = vadd.f32 %v1105, %v1099
        %v1107 = vadd.f32 %v1106, %v1100
        %v1108 = vadd.f32 %v1107, %v1101
        %v1109 = vadd.f32 %v1108, %v1102
        %v1110 = vadd.f32 %v1109, %v1103
        %v1111 = vrot.slane %v1110, 4
        %v1112 = vadd.f32 %v1110, %v1111
        %v1113 = vrot.slane %v1112, 2
        %v1114 = vadd.f32 %v1112, %v1113
        %v1115 = vrot.slane %v1114, 1
        %v1116 = vadd.f32 %v1114, %v1115
        %vm1117 = vcmask 1040384
        %v1118 = vsel %vm1117, %v1087, %v1116
        %1119 = vst [vmem:[%s355] sm:$0x3] %v1118
        %s1120 = sand.u32 %s90, 1
        %s1121 = scalar_lea.sflag [#allocation6], %s1120
        %s1122 = sand.u32 %s90, 1
        %s1123 = smul.addr %s1122, 64
        %s1124 = scalar_lea.vmem [#allocation5], %s1123
        %s1125 = sand.u32 %s118, 1
        %s1126 = scalar_lea.sflag [#allocation8], %s1125
        %s1127 = sand.u32 %s118, 1
        %s1128 = smul.addr %s1127, 2
        %s1129 = scalar_lea.vmem [#allocation7], %s1128
        // Predicated region
        $region71: #{tpu_custom_call.1} parent=61 // pred_check
          %p1130 = pneg %p100
        $region72: #{tpu_custom_call.1} parent=61 // pred_check_branch
          %1132 = sbr.rel (%p1130) target = $region74
        $region73: #{tpu_custom_call.1} parent=61 // pred_region
          %s1133 = sadd.s32 %s25, %s26
          %s1134 = smul.u32 8, %s1133
          %1136 = vsyncadd %s1121, 0
          %s1137 = smul.addr %s1134, 8
          %s1138 = scalar_lea.hbm %s2, %s1137
          %s1139 = sshll.u32 %s1124, 4
          %s1140 = int_to_ptr.vmem [resolvable:$true] %s1139
          %s1141 = sshll.u32 %s1138, 4
          %s1142 = int_to_ptr.hbm [resolvable:$true] %s1141
          %1147 = dma.vmem_to_hbm [thread:$0]  %s1140, 1024, %s1142, %s1121, 128, 128, 8
        $region74: #{tpu_custom_call.1} parent=61 // pred_fallthru
          _
        // Predicated region
        $region75: #{tpu_custom_call.1} parent=61 // pred_check
          %p1148 = pneg %p128
        $region76: #{tpu_custom_call.1} parent=61 // pred_check_branch
          %1150 = sbr.rel (%p1148) target = $region78
        $region77: #{tpu_custom_call.1} parent=61 // pred_region
          %s1151 = sadd.s32 %s25, %s26
          %1153 = vsyncadd %s1126, 0
          %s1154 = smul.addr %s1151, 2
          %s1155 = scalar_lea.hbm %s3, %s1154
          %s1157 = sshll.u32 %s1129, 4
          %s1158 = int_to_ptr.vmem [resolvable:$true] %s1157
          %s1159 = sshll.u32 %s1155, 4
          %s1160 = int_to_ptr.hbm [resolvable:$true] %s1159
          %1162 = dma.vmem_to_hbm [thread:$0]  %s1158, 32, %s1160, %s1126
        $region78: #{tpu_custom_call.1} parent=61 // pred_fallthru
          _
      $region62: #{tpu_custom_call.1} parent=5 // pred_fallthru
        _
      %p1163 = scmp.le.s32.totalorder 2, %s16
      // Predicated region
      $region79: #{tpu_custom_call.1} parent=5 // pred_check
        %p1164 = pneg %p1163
      $region80: #{tpu_custom_call.1} parent=5 // pred_check_branch
        %1166 = sbr.rel (%p1164) target = $region82
      $region81: #{tpu_custom_call.1} parent=5 // pred_region
        %s1167 = ssub.s32 %s16, 2
        // Predicated region
        $region83: #{tpu_custom_call.1} parent=81 // pred_check
          %p1168 = pneg %p106
        $region84: #{tpu_custom_call.1} parent=81 // pred_check_branch
          %1170 = sbr.rel (%p1168) target = $region86
        $region85: #{tpu_custom_call.1} parent=81 // pred_region
          %s1171 = sand.u32 %s91, 1
          %s1172 = scalar_lea.sflag [#allocation6], %s1171
          %s1173 = sand.u32 %s91, 1
          %s1174 = smul.addr %s1173, 64
          %s1175 = scalar_lea.vmem [#allocation5], %s1174
          %1177 = dma.done %s1172, 1024
        $region86: #{tpu_custom_call.1} parent=81 // pred_fallthru
          _
        // Predicated region
        $region87: #{tpu_custom_call.1} parent=81 // pred_check
          %p1178 = pneg %p134
        $region88: #{tpu_custom_call.1} parent=81 // pred_check_branch
          %1180 = sbr.rel (%p1178) target = $region90
        $region89: #{tpu_custom_call.1} parent=81 // pred_region
          %s1181 = sand.u32 %s119, 1
          %s1182 = scalar_lea.sflag [#allocation8], %s1181
          %s1183 = sand.u32 %s119, 1
          %s1184 = smul.addr %s1183, 2
          %s1185 = scalar_lea.vmem [#allocation7], %s1184
          %1187 = dma.done %s1182, 32
        $region90: #{tpu_custom_call.1} parent=81 // pred_fallthru
          _
      $region82: #{tpu_custom_call.1} parent=5 // pred_fallthru
        _
    $region6: #{tpu_custom_call.1} parent=1 // loop_footer
      %s20 = sadd.s32 1, %s16
    $region7: #{tpu_custom_call.1} parent=1 // loop_footer_branch
      %15 = sbr.rel target = $region3
    $region8: #{tpu_custom_call.1} parent=1 // loop_exit
      _
    %1188 = vsyncpa [#allocation6], 1
    %s1189 = scalar_lea.sflag [#allocation6], 1
    %1190 = vsyncpa %s1189, 1
    %1191 = vsyncpa [#allocation8], 1
    %s1192 = scalar_lea.sflag [#allocation8], 1
    %1193 = vsyncpa %s1192, 1

</llo_original>
